<compile_context>
chip_gen: v7x
topology: tpu7x:2x2x1
jax: 0.10.0
libtpu: 0.0.40
codegen_flags: <defaults>
</compile_context>

<pallas_src>
import functools

import jax
import jax.numpy as jnp
from jax import lax
from jax.experimental import pallas as pl
from jax.experimental.pallas import tpu as pltpu


def _round_up(x, m):
    return (x + m - 1) // m * m


def _vmem_limit_bytes():
    """~48 MiB on v7x (64 MiB physical VMEM), 96 MiB on v5e/v6e (128 MiB physical)."""
    try:
        cap = int(getattr(pltpu.get_tpu_info(), "vmem_capacity_bytes", 0))
    except Exception:
        cap = 0
    if cap <= 0:
        cap = 64 * 1024 * 1024            # conservative default (v7x physical VMEM)
    return min(96 * 1024 * 1024, max(32 * 1024 * 1024, (cap * 3) // 4))


def _bottleneck_kernel(H, W, HT,
                       x_ref,     # (H, W, Cin_p)        bf16 (batch squeezed; resident per n)
                       w1_ref,    # (Cin_p, C1_p)        bf16 (BN1 scale folded)
                       b1_ref,    # (1, C1_p)            f32
                       w2_ref,    # (3, 3*C1_p, C1_p)    bf16 (BN2 folded; K axis = dx-major)
                       b2_ref,    # (1, C1_p)            f32
                       w3_ref,    # (C1_p, C4_p)         bf16 (BN3 scale folded)
                       wd_ref,    # (Cin_p, C4_p)        bf16 (downsample BN scale folded)
                       bc_ref,    # (1, C4_p)            f32  (b3 + bd)
                       o_ref,     # (HT, W, C4_p)        bf16
                       pad_ref):  # VMEM (HT+2, W, C1_p) bf16 row-padded conv1 activation
    Cinp, C1p = w1_ref.shape
    C4p = w3_ref.shape[1]
    HTW = HT * W

    r = pl.program_id(1)
    n_rt = pl.num_programs(1)
    row0 = pl.multiple_of(r * HT, HT)

    def conv1(rows2d):  # (R, Cin_p) bf16 -> (R, C1_p) f32, bias + ReLU applied
        h = jnp.dot(rows2d, w1_ref[...], preferred_element_type=jnp.float32)
        return jnp.maximum(h + b1_ref[...], 0.0)

    # ---- conv1 (1x1) on this row tile, stored bf16 into the row-padded scratch ---------
    x2d = x_ref[pl.ds(row0, HT), :, :].reshape(HTW, Cinp)
    pad_ref[1:HT + 1] = conv1(x2d).astype(jnp.bfloat16).reshape(HT, W, C1p)

    # conv2's zero padding applies to conv1's *output*: halo rows are conv1 of the adjacent
    # image row, or zero at the image border (tiny always-computed matmul + scalar mask
    # instead of conditional control flow).
    top = x_ref[pl.ds(jnp.maximum(row0 - 1, 0), 1), :, :].reshape(W, Cinp)
    top_h = conv1(top) * (r > 0).astype(jnp.float32)
    pad_ref[0:1] = top_h.astype(jnp.bfloat16).reshape(1, W, C1p)

    bot = x_ref[pl.ds(jnp.minimum(row0 + HT, H - 1), 1), :, :].reshape(W, Cinp)
    bot_h = conv1(bot) * (r < n_rt - 1).astype(jnp.float32)
    pad_ref[HT + 1:HT + 2] = bot_h.astype(jnp.bfloat16).reshape(1, W, C1p)

    # ---- conv2 (3x3, stride 1, pad 1): register-carried f32 acc, 3 dots with K = 3*C1_p -
    a = pad_ref[...]                                            # (HT+2, W, C1_p) bf16
    zcol = jnp.zeros((HT + 2, 1, C1p), jnp.bfloat16)
    left = jnp.concatenate([zcol, a[:, :W - 1, :]], axis=1)     # left[., x]  = a[., x-1]
    right = jnp.concatenate([a[:, 1:, :], zcol], axis=1)        # right[., x] = a[., x+1]

    acc = None
    for dy in range(3):                                         # unrolled: 3 MXU dots total
        patch = jnp.concatenate(
            [left[dy:dy + HT], a[dy:dy + HT], right[dy:dy + HT]],
            axis=-1).reshape(HTW, 3 * C1p)
        part = jnp.dot(patch, w2_ref[dy], preferred_element_type=jnp.float32)
        acc = part if acc is None else acc + part
    h2 = jnp.maximum(acc + b2_ref[...], 0.0).astype(jnp.bfloat16)

    # ---- conv3 (1x1) + downsample (1x1) + residual add + ReLU: two accumulating dots ----
    out = jnp.dot(h2, w3_ref[...], preferred_element_type=jnp.float32)
    xt = x_ref[pl.ds(row0, HT), :, :].reshape(HTW, Cinp)        # re-read (keeps conv2 regs free)
    out = out + jnp.dot(xt, wd_ref[...], preferred_element_type=jnp.float32)
    out = jnp.maximum(out + bc_ref[...], 0.0)
    o_ref[...] = out.astype(o_ref.dtype).reshape(HT, W, C4p)


def bottleneck_forward_nhwc(x_nhwc, fp):
    """x_nhwc: (N, H, W, Cin) float. Returns (N, H, W, C4) bfloat16 (lane-dense path)."""
    N, H, W, Cin = x_nhwc.shape
    C1 = fp["w1"].shape[1]
    C4 = fp["w3"].shape[1]
    Cin_p = _round_up(Cin, 128)
    C1_p = _round_up(C1, 128)
    C4_p = _round_up(C4, 128)

    HT = 8 if H % 8 == 0 else H                  # row tile (must divide H)
    n_rt = H // HT

    x = jnp.pad(x_nhwc.astype(jnp.bfloat16),
                ((0, 0), (0, 0), (0, 0), (0, Cin_p - Cin)))

    def pad2(w, rr, cc):
        return jnp.pad(w, ((0, rr - w.shape[0]), (0, cc - w.shape[1])))

    w1p = pad2(fp["w1"], Cin_p, C1_p)
    w2p = jnp.pad(fp["w2"], ((0, 0), (0, 0), (0, C1_p - C1), (0, C1_p - C1))
                  ).reshape(3, 3 * C1_p, C1_p)   # K index = dx * C1_p + cin
    w3p = pad2(fp["w3"], C1_p, C4_p)
    wdp = pad2(fp["wd"], Cin_p, C4_p)
    b1p = jnp.pad(fp["b1"], ((0, 0), (0, C1_p - C1)))
    b2p = jnp.pad(fp["b2"], ((0, 0), (0, C1_p - C1)))
    bcp = jnp.pad(fp["bc"], ((0, 0), (0, C4_p - C4)))

    kernel = functools.partial(_bottleneck_kernel, H, W, HT)

    flops = 2 * N * H * W * (Cin_p * C1_p + 9 * C1_p * C1_p
                             + C1_p * C4_p + Cin_p * C4_p)
    bytes_accessed = (x.size * 2 + N * H * W * C4_p * 2
                      + (w1p.size + w2p.size + w3p.size + wdp.size) * 2
                      + (b1p.size + b2p.size + bcp.size) * 4)

    out = pl.pallas_call(
        kernel,
        out_shape=jax.ShapeDtypeStruct((N, H, W, C4_p), jnp.bfloat16),
        grid_spec=pltpu.PrefetchScalarGridSpec(
            num_scalar_prefetch=0,
            grid=(N, n_rt),
            in_specs=[
                pl.BlockSpec((None, H, W, Cin_p), lambda n, r: (n, 0, 0, 0)),
                pl.BlockSpec((Cin_p, C1_p),       lambda n, r: (0, 0)),
                pl.BlockSpec((1, C1_p),           lambda n, r: (0, 0)),
                pl.BlockSpec((3, 3 * C1_p, C1_p), lambda n, r: (0, 0, 0)),
                pl.BlockSpec((1, C1_p),           lambda n, r: (0, 0)),
                pl.BlockSpec((C1_p, C4_p),        lambda n, r: (0, 0)),
                pl.BlockSpec((Cin_p, C4_p),       lambda n, r: (0, 0)),
                pl.BlockSpec((1, C4_p),           lambda n, r: (0, 0)),
            ],
            out_specs=pl.BlockSpec((None, HT, W, C4_p), lambda n, r: (n, r, 0, 0)),
            scratch_shapes=[pltpu.VMEM((HT + 2, W, C1_p), jnp.bfloat16)]),
        compiler_params=pltpu.CompilerParams(
            dimension_semantics=("parallel", "parallel"),
            vmem_limit_bytes=_vmem_limit_bytes()),
        cost_estimate=pl.CostEstimate(flops=flops, transcendentals=0,
                                      bytes_accessed=bytes_accessed),
    )(x, w1p, b1p, w2p, b2p, w3p, wdp, bcp)

    return out[..., :C4]


@jax.jit
def bottleneck_forward(x_nchw, fp):
    """x_nchw: (N, Cin, H, W) float32 (PyTorch layout). Returns float32 NCHW."""
    x = jnp.transpose(x_nchw.astype(jnp.bfloat16), (0, 2, 3, 1))   # bf16 edge transpose
    y = bottleneck_forward_nhwc(x, fp)                              # (N, H, W, C4) bf16
    return jnp.transpose(y, (0, 3, 1, 2)).astype(jnp.float32)


# ----------------------------- parameter setup ----------------------------- #

def _fold_bn(gamma, beta, mean, var, eps=1e-5):
    scale = gamma / jnp.sqrt(var + eps)
    bias = beta - mean * scale
    return scale[None, :].astype(jnp.float32), bias[None, :].astype(jnp.float32)


def make_params(key, in_channels, out_channels, widening_factor=1, expansion=4):
    """Random module parameters: conv weights in matmul/HWIO form + folded eval-mode BN."""
    C1 = out_channels * widening_factor
    C4 = out_channels * expansion
    ks = jax.random.split(key, 8)

    def bn(k, c):
        k1, k2, k3, k4 = jax.random.split(k, 4)
        gamma = 1.0 + 0.1 * jax.random.normal(k1, (c,), jnp.float32)
        beta = 0.1 * jax.random.normal(k2, (c,), jnp.float32)
        mean = 0.1 * jax.random.normal(k3, (c,), jnp.float32)
        var = 0.5 + jnp.abs(jax.random.normal(k4, (c,), jnp.float32))
        return _fold_bn(gamma, beta, mean, var)

    s1, b1 = bn(ks[0], C1)
    s2, b2 = bn(ks[1], C1)
    s3, b3 = bn(ks[2], C4)
    sd, bd = bn(ks[3], C4)

    return dict(
        # 1x1 conv -> (Cin, Cout); 3x3 conv -> (kh, kw, Cin, Cout) == HWIO
        w1=0.2 * jax.random.normal(ks[4], (in_channels, C1), jnp.float32),
        w2=0.2 * jax.random.normal(ks[5], (3, 3, C1, C1), jnp.float32),
        w3=0.2 * jax.random.normal(ks[6], (C1, C4), jnp.float32),
        wd=0.2 * jax.random.normal(ks[7], (in_channels, C4), jnp.float32),
        s1=s1, b1=b1, s2=s2, b2=b2, s3=s3, b3=b3, sd=sd, bd=bd,
    )


def prepare_params(p):
    """Fold eval-mode BN scales into the conv weights (bf16 for the MXU) and fuse the
    conv3 / downsample biases (both precede the shared final ReLU). Biases stay f32."""
    return dict(
        w1=(p["w1"] * p["s1"]).astype(jnp.bfloat16),
        w2=(p["w2"] * p["s2"]).astype(jnp.bfloat16),
        w3=(p["w3"] * p["s3"]).astype(jnp.bfloat16),
        wd=(p["wd"] * p["sd"]).astype(jnp.bfloat16),
        b1=p["b1"], b2=p["b2"], bc=p["b3"] + p["bd"],
    )


# ------------------------- pure-JAX reference (check) ----------------------- #

def ref_bottleneck(x_nchw, fp):
    """Reference matching the kernel's numerics (bf16 matmul operands, f32 accumulation)."""
    f32 = lambda a: a.astype(jnp.float32)
    x = f32(jnp.transpose(x_nchw, (0, 2, 3, 1)).astype(jnp.bfloat16))
    dn = ("NHWC", "HWIO", "NHWC")

    def conv1x1(h, w):  # w: (Ci, Co)
        return lax.conv_general_dilated(h, f32(w)[None, None], (1, 1), "VALID",
                                        dimension_numbers=dn)

    h = jnp.maximum(conv1x1(x, fp["w1"]) + fp["b1"], 0.0)
    h = f32(h.astype(jnp.bfloat16))                      # kernel feeds conv2 in bf16
    h = lax.conv_general_dilated(h, f32(fp["w2"]), (1, 1), [(1, 1), (1, 1)],
                                 dimension_numbers=dn)
    h = jnp.maximum(h + fp["b2"], 0.0)
    h = f32(h.astype(jnp.bfloat16))                      # kernel feeds conv3 in bf16
    out = conv1x1(h, fp["w3"]) + conv1x1(x, fp["wd"]) + fp["bc"]
    return jnp.transpose(jnp.maximum(out, 0.0), (0, 3, 1, 2))


if __name__ == "__main__":
    key = jax.random.PRNGKey(0)
    kx, kp = jax.random.split(key)

    N, Cin, H, W = 2, 4, 16, 16
    out_channels = 4  # bottleneck width 4, output channels 4*4 = 16 (downsample active)

    x = jax.random.normal(kx, (N, Cin, H, W), jnp.float32)
    params = make_params(kp, Cin, out_channels)
    fp = prepare_params(params)

    y = bottleneck_forward(x, fp)
    y = jax.block_until_ready(y)

    assert y.shape == (N, out_channels * 4, H, W), y.shape

    y_ref = ref_bottleneck(x, fp)
    max_err = float(jnp.max(jnp.abs(y - y_ref)))
    # Kernel output is bf16-quantized, reference stays f32 -> allow ~1 bf16 ulp at |y|.
    tol = 1e-2 + 4e-3 * float(jnp.max(jnp.abs(y_ref)))
    assert max_err < tol, f"mismatch vs reference: {max_err} (tol {tol})"

    print("KERNEL_OK")
</pallas_src>

<mosaic_0001>
module attributes {stable_mosaic.version = 11 : i64} {
  func.func @_bottleneck_kernel(%arg0: i32, %arg1: i32, %arg2: memref<1x16x16x128xbf16, #tpu.memory_space<vmem>>, %arg3: memref<128x128xbf16, #tpu.memory_space<vmem>>, %arg4: memref<1x128xf32, #tpu.memory_space<vmem>>, %arg5: memref<3x384x128xbf16, #tpu.memory_space<vmem>>, %arg6: memref<1x128xf32, #tpu.memory_space<vmem>>, %arg7: memref<128x128xbf16, #tpu.memory_space<vmem>>, %arg8: memref<128x128xbf16, #tpu.memory_space<vmem>>, %arg9: memref<1x128xf32, #tpu.memory_space<vmem>>, %arg10: memref<1x8x16x128xbf16, #tpu.memory_space<vmem>>, %arg11: memref<10x16x128xbf16, #tpu.memory_space<vmem>>) attributes {dimension_semantics = [#tpu.dimension_semantics<parallel>, #tpu.dimension_semantics<parallel>], iteration_bounds = array<i64: 2, 2>, scalar_prefetch = 0 : i64, scratch_operands = 1 : i64, tpu.core_type = #tpu.core_type<tc>, window_params = [{transform_indices = @transform_0, window_bounds = array<i64: 1, 16, 16, 128>}, {pipeline_mode = #tpu.pipeline_mode<synchronous>, transform_indices = @transform_1, window_bounds = array<i64: 128, 128>}, {pipeline_mode = #tpu.pipeline_mode<synchronous>, transform_indices = @transform_2, window_bounds = array<i64: 1, 128>}, {pipeline_mode = #tpu.pipeline_mode<synchronous>, transform_indices = @transform_3, window_bounds = array<i64: 3, 384, 128>}, {pipeline_mode = #tpu.pipeline_mode<synchronous>, transform_indices = @transform_4, window_bounds = array<i64: 1, 128>}, {pipeline_mode = #tpu.pipeline_mode<synchronous>, transform_indices = @transform_5, window_bounds = array<i64: 128, 128>}, {pipeline_mode = #tpu.pipeline_mode<synchronous>, transform_indices = @transform_6, window_bounds = array<i64: 128, 128>}, {pipeline_mode = #tpu.pipeline_mode<synchronous>, transform_indices = @transform_7, window_bounds = array<i64: 1, 128>}, {transform_indices = @transform_8, window_bounds = array<i64: 1, 8, 16, 128>}]} {
    %c8_i32 = arith.constant 8 : i32
    %0 = arith.muli %arg1, %c8_i32 : i32
    %1 = tpu.assume_multiple %0, 8 : i32
    %c0 = arith.constant 0 : index
    %2 = arith.index_cast %1 : i32 to index
    %c0_0 = arith.constant 0 : index
    %c0_1 = arith.constant 0 : index
    %3 = vector.load %arg2[%c0, %2, %c0_0, %c0_1] : memref<1x16x16x128xbf16, #tpu.memory_space<vmem>>, vector<1x8x16x128xbf16>
    %4 = vector.shape_cast %3 : vector<1x8x16x128xbf16> to vector<8x16x128xbf16>
    %5 = vector.shape_cast %4 : vector<8x16x128xbf16> to vector<128x128xbf16>
    %c0_2 = arith.constant 0 : index
    %c0_3 = arith.constant 0 : index
    %6 = vector.load %arg3[%c0_2, %c0_3] : memref<128x128xbf16, #tpu.memory_space<vmem>>, vector<128x128xbf16>
    %cst = arith.constant dense<0.000000e+00> : vector<128x128xf32>
    %7 = tpu.matmul %5, %6, %cst {dimension_numbers = #tpu.dot_dimension_numbers<[1], [0], [0], [1], [0, 0, 1, 1], [], []>} : vector<128x128xbf16>, vector<128x128xbf16>, vector<128x128xf32> -> vector<128x128xf32>
    %c0_4 = arith.constant 0 : index
    %c0_5 = arith.constant 0 : index
    %8 = vector.load %arg4[%c0_4, %c0_5] : memref<1x128xf32, #tpu.memory_space<vmem>>, vector<1x128xf32>
    %9 = vector.broadcast %8 : vector<1x128xf32> to vector<128x128xf32>
    %10 = arith.addf %7, %9 : vector<128x128xf32>
    %cst_6 = arith.constant 0.000000e+00 : f32
    %11 = vector.broadcast %cst_6 : f32 to vector<128x128xf32>
    %12 = arith.maximumf %10, %11 : vector<128x128xf32>
    %13 = arith.truncf %12 : vector<128x128xf32> to vector<128x128xbf16>
    %14 = vector.shape_cast %13 : vector<128x128xbf16> to vector<8x16x128xbf16>
    %c1 = arith.constant 1 : index
    %c0_7 = arith.constant 0 : index
    %c0_8 = arith.constant 0 : index
    %15 = vector.load %arg11[%c1, %c0_7, %c0_8] : memref<10x16x128xbf16, #tpu.memory_space<vmem>>, vector<8x16x128xbf16>
    tpu.vector_store %arg11[%c1, %c0_7, %c0_8], %14 {strides = array<i32>} : memref<10x16x128xbf16, #tpu.memory_space<vmem>>, vector<8x16x128xbf16>,
    %c1_i32 = arith.constant 1 : i32
    %16 = arith.subi %1, %c1_i32 : i32
    %c0_i32 = arith.constant 0 : i32
    %17 = arith.maxsi %16, %c0_i32 : i32
    %c0_9 = arith.constant 0 : index
    %18 = arith.index_cast %17 : i32 to index
    %c0_10 = arith.constant 0 : index
    %c0_11 = arith.constant 0 : index
    %19 = vector.load %arg2[%c0_9, %18, %c0_10, %c0_11] : memref<1x16x16x128xbf16, #tpu.memory_space<vmem>>, vector<1x1x16x128xbf16>
    %20 = vector.shape_cast %19 : vector<1x1x16x128xbf16> to vector<1x16x128xbf16>
    %21 = vector.shape_cast %20 : vector<1x16x128xbf16> to vector<16x128xbf16>
    %c0_12 = arith.constant 0 : index
    %c0_13 = arith.constant 0 : index
    %22 = vector.load %arg3[%c0_12, %c0_13] : memref<128x128xbf16, #tpu.memory_space<vmem>>, vector<128x128xbf16>
    %cst_14 = arith.constant dense<0.000000e+00> : vector<16x128xf32>
    %23 = tpu.matmul %21, %22, %cst_14 {dimension_numbers = #tpu.dot_dimension_numbers<[1], [0], [0], [1], [0, 0, 1, 1], [], []>} : vector<16x128xbf16>, vector<128x128xbf16>, vector<16x128xf32> -> vector<16x128xf32>
    %c0_15 = arith.constant 0 : index
    %c0_16 = arith.constant 0 : index
    %24 = vector.load %arg4[%c0_15, %c0_16] : memref<1x128xf32, #tpu.memory_space<vmem>>, vector<1x128xf32>
    %25 = vector.broadcast %24 : vector<1x128xf32> to vector<16x128xf32>
    %26 = arith.addf %23, %25 : vector<16x128xf32>
    %cst_17 = arith.constant 0.000000e+00 : f32
    %27 = vector.broadcast %cst_17 : f32 to vector<16x128xf32>
    %28 = arith.maximumf %26, %27 : vector<16x128xf32>
    %c0_i32_18 = arith.constant 0 : i32
    %29 = arith.cmpi sgt, %arg1, %c0_i32_18 : i32
    %30 = arith.extui %29 : i1 to i32
    %31 = arith.sitofp %30 : i32 to f32
    %32 = vector.broadcast %31 : f32 to vector<16x128xf32>
    %33 = arith.mulf %28, %32 : vector<16x128xf32>
    %34 = arith.truncf %33 : vector<16x128xf32> to vector<16x128xbf16>
    %35 = vector.shape_cast %34 : vector<16x128xbf16> to vector<1x16x128xbf16>
    %c0_19 = arith.constant 0 : index
    %c0_20 = arith.constant 0 : index
    %c0_21 = arith.constant 0 : index
    %36 = vector.load %arg11[%c0_19, %c0_20, %c0_21] : memref<10x16x128xbf16, #tpu.memory_space<vmem>>, vector<1x16x128xbf16>
    tpu.vector_store %arg11[%c0_19, %c0_20, %c0_21], %35 {strides = array<i32>} : memref<10x16x128xbf16, #tpu.memory_space<vmem>>, vector<1x16x128xbf16>,
    %c8_i32_22 = arith.constant 8 : i32
    %37 = arith.addi %1, %c8_i32_22 : i32
    %c15_i32 = arith.constant 15 : i32
    %38 = arith.minsi %37, %c15_i32 : i32
    %c0_23 = arith.constant 0 : index
    %39 = arith.index_cast %38 : i32 to index
    %c0_24 = arith.constant 0 : index
    %c0_25 = arith.constant 0 : index
    %40 = vector.load %arg2[%c0_23, %39, %c0_24, %c0_25] : memref<1x16x16x128xbf16, #tpu.memory_space<vmem>>, vector<1x1x16x128xbf16>
    %41 = vector.shape_cast %40 : vector<1x1x16x128xbf16> to vector<1x16x128xbf16>
    %42 = vector.shape_cast %41 : vector<1x16x128xbf16> to vector<16x128xbf16>
    %c0_26 = arith.constant 0 : index
    %c0_27 = arith.constant 0 : index
    %43 = vector.load %arg3[%c0_26, %c0_27] : memref<128x128xbf16, #tpu.memory_space<vmem>>, vector<128x128xbf16>
    %cst_28 = arith.constant dense<0.000000e+00> : vector<16x128xf32>
    %44 = tpu.matmul %42, %43, %cst_28 {dimension_numbers = #tpu.dot_dimension_numbers<[1], [0], [0], [1], [0, 0, 1, 1], [], []>} : vector<16x128xbf16>, vector<128x128xbf16>, vector<16x128xf32> -> vector<16x128xf32>
    %c0_29 = arith.constant 0 : index
    %c0_30 = arith.constant 0 : index
    %45 = vector.load %arg4[%c0_29, %c0_30] : memref<1x128xf32, #tpu.memory_space<vmem>>, vector<1x128xf32>
    %46 = vector.broadcast %45 : vector<1x128xf32> to vector<16x128xf32>
    %47 = arith.addf %44, %46 : vector<16x128xf32>
    %cst_31 = arith.constant 0.000000e+00 : f32
    %48 = vector.broadcast %cst_31 : f32 to vector<16x128xf32>
    %49 = arith.maximumf %47, %48 : vector<16x128xf32>
    %c1_i32_32 = arith.constant 1 : i32
    %50 = arith.cmpi slt, %arg1, %c1_i32_32 : i32
    %51 = arith.extui %50 : i1 to i32
    %52 = arith.sitofp %51 : i32 to f32
    %53 = vector.broadcast %52 : f32 to vector<16x128xf32>
    %54 = arith.mulf %49, %53 : vector<16x128xf32>
    %55 = arith.truncf %54 : vector<16x128xf32> to vector<16x128xbf16>
    %56 = vector.shape_cast %55 : vector<16x128xbf16> to vector<1x16x128xbf16>
    %c9 = arith.constant 9 : index
    %c0_33 = arith.constant 0 : index
    %c0_34 = arith.constant 0 : index
    %57 = vector.load %arg11[%c9, %c0_33, %c0_34] : memref<10x16x128xbf16, #tpu.memory_space<vmem>>, vector<1x16x128xbf16>
    tpu.vector_store %arg11[%c9, %c0_33, %c0_34], %56 {strides = array<i32>} : memref<10x16x128xbf16, #tpu.memory_space<vmem>>, vector<1x16x128xbf16>,
    %c0_35 = arith.constant 0 : index
    %c0_36 = arith.constant 0 : index
    %c0_37 = arith.constant 0 : index
    %58 = vector.load %arg11[%c0_35, %c0_36, %c0_37] : memref<10x16x128xbf16, #tpu.memory_space<vmem>>, vector<10x16x128xbf16>
    %cst_38 = arith.constant 0.000000e+00 : bf16
    %59 = vector.broadcast %cst_38 : bf16 to vector<10x1x128xbf16>
    %60 = vector.extract_strided_slice %58 {offsets = [0, 0, 0], sizes = [10, 15, 128], strides = [1, 1, 1]} : vector<10x16x128xbf16> to vector<10x15x128xbf16>
    %61 = tpu.concatenate %59, %60 in 1 : vector<10x1x128xbf16>, vector<10x15x128xbf16> -> vector<10x16x128xbf16>
    %62 = vector.extract_strided_slice %58 {offsets = [0, 1, 0], sizes = [10, 15, 128], strides = [1, 1, 1]} : vector<10x16x128xbf16> to vector<10x15x128xbf16>
    %63 = tpu.concatenate %62, %59 in 1 : vector<10x15x128xbf16>, vector<10x1x128xbf16> -> vector<10x16x128xbf16>
    %64 = vector.extract_strided_slice %61 {offsets = [0, 0, 0], sizes = [8, 16, 128], strides = [1, 1, 1]} : vector<10x16x128xbf16> to vector<8x16x128xbf16>
    %65 = vector.extract_strided_slice %58 {offsets = [0, 0, 0], sizes = [8, 16, 128], strides = [1, 1, 1]} : vector<10x16x128xbf16> to vector<8x16x128xbf16>
    %66 = vector.extract_strided_slice %63 {offsets = [0, 0, 0], sizes = [8, 16, 128], strides = [1, 1, 1]} : vector<10x16x128xbf16> to vector<8x16x128xbf16>
    %67 = tpu.concatenate %64, %65, %66 in 2 : vector<8x16x128xbf16>, vector<8x16x128xbf16>, vector<8x16x128xbf16> -> vector<8x16x384xbf16>
    %68 = vector.shape_cast %67 : vector<8x16x384xbf16> to vector<128x384xbf16>
    %c0_39 = arith.constant 0 : index
    %c0_40 = arith.constant 0 : index
    %c0_41 = arith.constant 0 : index
    %69 = vector.load %arg5[%c0_39, %c0_40, %c0_41] : memref<3x384x128xbf16, #tpu.memory_space<vmem>>, vector<1x384x128xbf16>
    %70 = vector.shape_cast %69 : vector<1x384x128xbf16> to vector<384x128xbf16>
    %cst_42 = arith.constant dense<0.000000e+00> : vector<128x128xf32>
    %71 = tpu.matmul %68, %70, %cst_42 {dimension_numbers = #tpu.dot_dimension_numbers<[1], [0], [0], [1], [0, 0, 1, 1], [], []>} : vector<128x384xbf16>, vector<384x128xbf16>, vector<128x128xf32> -> vector<128x128xf32>
    %72 = vector.extract_strided_slice %61 {offsets = [1, 0, 0], sizes = [8, 16, 128], strides = [1, 1, 1]} : vector<10x16x128xbf16> to vector<8x16x128xbf16>
    %73 = vector.extract_strided_slice %58 {offsets = [1, 0, 0], sizes = [8, 16, 128], strides = [1, 1, 1]} : vector<10x16x128xbf16> to vector<8x16x128xbf16>
    %74 = vector.extract_strided_slice %63 {offsets = [1, 0, 0], sizes = [8, 16, 128], strides = [1, 1, 1]} : vector<10x16x128xbf16> to vector<8x16x128xbf16>
    %75 = tpu.concatenate %72, %73, %74 in 2 : vector<8x16x128xbf16>, vector<8x16x128xbf16>, vector<8x16x128xbf16> -> vector<8x16x384xbf16>
    %76 = vector.shape_cast %75 : vector<8x16x384xbf16> to vector<128x384xbf16>
    %c1_43 = arith.constant 1 : index
    %c0_44 = arith.constant 0 : index
    %c0_45 = arith.constant 0 : index
    %77 = vector.load %arg5[%c1_43, %c0_44, %c0_45] : memref<3x384x128xbf16, #tpu.memory_space<vmem>>, vector<1x384x128xbf16>
    %78 = vector.shape_cast %77 : vector<1x384x128xbf16> to vector<384x128xbf16>
    %cst_46 = arith.constant dense<0.000000e+00> : vector<128x128xf32>
    %79 = tpu.matmul %76, %78, %cst_46 {dimension_numbers = #tpu.dot_dimension_numbers<[1], [0], [0], [1], [0, 0, 1, 1], [], []>} : vector<128x384xbf16>, vector<384x128xbf16>, vector<128x128xf32> -> vector<128x128xf32>
    %80 = arith.addf %71, %79 : vector<128x128xf32>
    %81 = vector.extract_strided_slice %61 {offsets = [2, 0, 0], sizes = [8, 16, 128], strides = [1, 1, 1]} : vector<10x16x128xbf16> to vector<8x16x128xbf16>
    %82 = vector.extract_strided_slice %58 {offsets = [2, 0, 0], sizes = [8, 16, 128], strides = [1, 1, 1]} : vector<10x16x128xbf16> to vector<8x16x128xbf16>
    %83 = vector.extract_strided_slice %63 {offsets = [2, 0, 0], sizes = [8, 16, 128], strides = [1, 1, 1]} : vector<10x16x128xbf16> to vector<8x16x128xbf16>
    %84 = tpu.concatenate %81, %82, %83 in 2 : vector<8x16x128xbf16>, vector<8x16x128xbf16>, vector<8x16x128xbf16> -> vector<8x16x384xbf16>
    %85 = vector.shape_cast %84 : vector<8x16x384xbf16> to vector<128x384xbf16>
    %c2 = arith.constant 2 : index
    %c0_47 = arith.constant 0 : index
    %c0_48 = arith.constant 0 : index
    %86 = vector.load %arg5[%c2, %c0_47, %c0_48] : memref<3x384x128xbf16, #tpu.memory_space<vmem>>, vector<1x384x128xbf16>
    %87 = vector.shape_cast %86 : vector<1x384x128xbf16> to vector<384x128xbf16>
    %cst_49 = arith.constant dense<0.000000e+00> : vector<128x128xf32>
    %88 = tpu.matmul %85, %87, %cst_49 {dimension_numbers = #tpu.dot_dimension_numbers<[1], [0], [0], [1], [0, 0, 1, 1], [], []>} : vector<128x384xbf16>, vector<384x128xbf16>, vector<128x128xf32> -> vector<128x128xf32>
    %89 = arith.addf %80, %88 : vector<128x128xf32>
    %c0_50 = arith.constant 0 : index
    %c0_51 = arith.constant 0 : index
    %90 = vector.load %arg6[%c0_50, %c0_51] : memref<1x128xf32, #tpu.memory_space<vmem>>, vector<1x128xf32>
    %91 = vector.broadcast %90 : vector<1x128xf32> to vector<128x128xf32>
    %92 = arith.addf %89, %91 : vector<128x128xf32>
    %cst_52 = arith.constant 0.000000e+00 : f32
    %93 = vector.broadcast %cst_52 : f32 to vector<128x128xf32>
    %94 = arith.maximumf %92, %93 : vector<128x128xf32>
    %95 = arith.truncf %94 : vector<128x128xf32> to vector<128x128xbf16>
    %c0_53 = arith.constant 0 : index
    %c0_54 = arith.constant 0 : index
    %96 = vector.load %arg7[%c0_53, %c0_54] : memref<128x128xbf16, #tpu.memory_space<vmem>>, vector<128x128xbf16>
    %cst_55 = arith.constant dense<0.000000e+00> : vector<128x128xf32>
    %97 = tpu.matmul %95, %96, %cst_55 {dimension_numbers = #tpu.dot_dimension_numbers<[1], [0], [0], [1], [0, 0, 1, 1], [], []>} : vector<128x128xbf16>, vector<128x128xbf16>, vector<128x128xf32> -> vector<128x128xf32>
    %c0_56 = arith.constant 0 : index
    %98 = arith.index_cast %1 : i32 to index
    %c0_57 = arith.constant 0 : index
    %c0_58 = arith.constant 0 : index
    %99 = vector.load %arg2[%c0_56, %98, %c0_57, %c0_58] : memref<1x16x16x128xbf16, #tpu.memory_space<vmem>>, vector<1x8x16x128xbf16>
    %100 = vector.shape_cast %99 : vector<1x8x16x128xbf16> to vector<8x16x128xbf16>
    %101 = vector.shape_cast %100 : vector<8x16x128xbf16> to vector<128x128xbf16>
    %c0_59 = arith.constant 0 : index
    %c0_60 = arith.constant 0 : index
    %102 = vector.load %arg8[%c0_59, %c0_60] : memref<128x128xbf16, #tpu.memory_space<vmem>>, vector<128x128xbf16>
    %cst_61 = arith.constant dense<0.000000e+00> : vector<128x128xf32>
    %103 = tpu.matmul %101, %102, %cst_61 {dimension_numbers = #tpu.dot_dimension_numbers<[1], [0], [0], [1], [0, 0, 1, 1], [], []>} : vector<128x128xbf16>, vector<128x128xbf16>, vector<128x128xf32> -> vector<128x128xf32>
    %104 = arith.addf %97, %103 : vector<128x128xf32>
    %c0_62 = arith.constant 0 : index
    %c0_63 = arith.constant 0 : index
    %105 = vector.load %arg9[%c0_62, %c0_63] : memref<1x128xf32, #tpu.memory_space<vmem>>, vector<1x128xf32>
    %106 = vector.broadcast %105 : vector<1x128xf32> to vector<128x128xf32>
    %107 = arith.addf %104, %106 : vector<128x128xf32>
    %cst_64 = arith.constant 0.000000e+00 : f32
    %108 = vector.broadcast %cst_64 : f32 to vector<128x128xf32>
    %109 = arith.maximumf %107, %108 : vector<128x128xf32>
    %110 = arith.truncf %109 : vector<128x128xf32> to vector<128x128xbf16>
    %111 = vector.shape_cast %110 : vector<128x128xbf16> to vector<8x16x128xbf16>
    %c0_65 = arith.constant 0 : index
    %c0_66 = arith.constant 0 : index
    %c0_67 = arith.constant 0 : index
    %c0_68 = arith.constant 0 : index
    %112 = vector.load %arg10[%c0_65, %c0_66, %c0_67, %c0_68] : memref<1x8x16x128xbf16, #tpu.memory_space<vmem>>, vector<1x8x16x128xbf16>
    %113 = vector.shape_cast %112 : vector<1x8x16x128xbf16> to vector<8x16x128xbf16>
    %114 = vector.shape_cast %111 : vector<8x16x128xbf16> to vector<1x8x16x128xbf16>
    tpu.vector_store %arg10[%c0_65, %c0_66, %c0_67, %c0_68], %114 {strides = array<i32>} : memref<1x8x16x128xbf16, #tpu.memory_space<vmem>>, vector<1x8x16x128xbf16>,
    return
  }
  func.func @transform_0(%arg0: i32, %arg1: i32) -> (i32, i32, i32, i32) {
    %c0_i32 = arith.constant 0 : i32
    %c0_i32_0 = arith.constant 0 : i32
    %c0_i32_1 = arith.constant 0 : i32
    %c0_i32_2 = arith.constant 0 : i32
    return %arg0, %c0_i32, %c0_i32_0, %c0_i32_1 : i32, i32, i32, i32
  }
  func.func @transform_1(%arg0: i32, %arg1: i32) -> (i32, i32) {
    %c0_i32 = arith.constant 0 : i32
    %c0_i32_0 = arith.constant 0 : i32
    %c0_i32_1 = arith.constant 0 : i32
    return %c0_i32, %c0_i32_0 : i32, i32
  }
  func.func @transform_2(%arg0: i32, %arg1: i32) -> (i32, i32) {
    %c0_i32 = arith.constant 0 : i32
    %c0_i32_0 = arith.constant 0 : i32
    %c0_i32_1 = arith.constant 0 : i32
    return %c0_i32, %c0_i32_0 : i32, i32
  }
  func.func @transform_3(%arg0: i32, %arg1: i32) -> (i32, i32, i32) {
    %c0_i32 = arith.constant 0 : i32
    %c0_i32_0 = arith.constant 0 : i32
    %c0_i32_1 = arith.constant 0 : i32
    %c0_i32_2 = arith.constant 0 : i32
    return %c0_i32, %c0_i32_0, %c0_i32_1 : i32, i32, i32
  }
  func.func @transform_4(%arg0: i32, %arg1: i32) -> (i32, i32) {
    %c0_i32 = arith.constant 0 : i32
    %c0_i32_0 = arith.constant 0 : i32
    %c0_i32_1 = arith.constant 0 : i32
    return %c0_i32, %c0_i32_0 : i32, i32
  }
  func.func @transform_5(%arg0: i32, %arg1: i32) -> (i32, i32) {
    %c0_i32 = arith.constant 0 : i32
    %c0_i32_0 = arith.constant 0 : i32
    %c0_i32_1 = arith.constant 0 : i32
    return %c0_i32, %c0_i32_0 : i32, i32
  }
  func.func @transform_6(%arg0: i32, %arg1: i32) -> (i32, i32) {
    %c0_i32 = arith.constant 0 : i32
    %c0_i32_0 = arith.constant 0 : i32
    %c0_i32_1 = arith.constant 0 : i32
    return %c0_i32, %c0_i32_0 : i32, i32
  }
  func.func @transform_7(%arg0: i32, %arg1: i32) -> (i32, i32) {
    %c0_i32 = arith.constant 0 : i32
    %c0_i32_0 = arith.constant 0 : i32
    %c0_i32_1 = arith.constant 0 : i32
    return %c0_i32, %c0_i32_0 : i32, i32
  }
  func.func @transform_8(%arg0: i32, %arg1: i32) -> (i32, i32, i32, i32) {
    %c0_i32 = arith.constant 0 : i32
    %c0_i32_0 = arith.constant 0 : i32
    %c0_i32_1 = arith.constant 0 : i32
    return %arg0, %arg1, %c0_i32, %c0_i32_0 : i32, i32, i32, i32
  }
}

</mosaic_0001>

<llo_original>
// kernel: bottleneck_forward.1
$region0: #{bottleneck_forward.1}
  #allocation0 [shape = 'u32[]', space=smem, size = 0x4, offset = 0x4, fixed_abs, tag = 'smem constant byte address 0x4 - core index']
  #allocation1 [shape = 'u32[144,128]{1,0:T(1,128)}', space=vmem, size = 0x12000, scoped, tag = 'internal scratch']
  #allocation2 [shape = 'bf16[10,16,128]{2,1,0:T(16,128)(2,1)}', space=vmem, size = 0xa000, scoped, tag = 'scratch operand']
  %s0 = inlined_call_operand.vmem [shape: bf16[2,16,16,128], index: 0, kind: input, shape index: {}]
  %s1 = inlined_call_operand.vmem [shape: bf16[128,128], index: 1, kind: input, shape index: {}]
  %s2 = inlined_call_operand.vmem [shape: f32[1,128], index: 2, kind: input, shape index: {}]
  %s3 = inlined_call_operand.vmem [shape: bf16[3,384,128], index: 3, kind: input, shape index: {}]
  %s4 = inlined_call_operand.vmem [shape: f32[1,128], index: 4, kind: input, shape index: {}]
  %s5 = inlined_call_operand.vmem [shape: bf16[128,128], index: 5, kind: input, shape index: {}]
  %s6 = inlined_call_operand.vmem [shape: bf16[128,128], index: 6, kind: input, shape index: {}]
  %s7 = inlined_call_operand.vmem [shape: f32[1,128], index: 7, kind: input, shape index: {}]
  %s8 = inlined_call_operand.vmem [shape: bf16[2,16,16,128], index: 8, kind: output, shape index: {}]
  %s9 = sld [smem:[#allocation0]]
  $region65: #{bottleneck_forward.1} parent=0
    _
  %s11 = ssub.s32 1, %s9
  %s12 = scalar_select 0, %s11, %s9
  loop: start=0, step=1, limit=6
  $region2: #{bottleneck_forward.1} parent=0 // loop_pre_header
    _
  $region3: #{bottleneck_forward.1} parent=0 // loop_header
    %s14 = sphi 0, %s18
    %p15 = scmp.ge.s32.totalorder %s14, 6
    %s21 = sphi 0, %s33
    %s22 = sphi 0, %s29
    %s23 = sphi 0, %s21
    %s24 = sphi 0, %s22
    %s25 = sphi 0, %s23
    %s26 = sphi 0, %s24
    %s36 = sphi 0, %s38
    %s39 = sphi 0, %s36
    %s40 = sphi 0, %s39
    %s56 = sphi 0, %s40
    %s60 = sphi 0, %s60
    %s62 = sphi 0, %s60
    %s63 = sphi 0, %s62
    %s77 = sphi 0, %s63
    %s81 = sphi 0, %s81
    %s83 = sphi 0, %s81
    %s84 = sphi 0, %s83
    %s98 = sphi 0, %s84
    %s102 = sphi 0, %s102
    %s104 = sphi 0, %s102
    %s105 = sphi 0, %s104
    %s119 = sphi 0, %s105
    %s123 = sphi 0, %s123
    %s125 = sphi 0, %s123
    %s126 = sphi 0, %s125
    %s140 = sphi 0, %s126
    %s144 = sphi 0, %s144
    %s146 = sphi 0, %s144
    %s147 = sphi 0, %s146
    %s161 = sphi 0, %s147
    %s165 = sphi 0, %s165
    %s167 = sphi 0, %s165
    %s168 = sphi 0, %s167
    %s182 = sphi 0, %s168
    %s186 = sphi 0, %s186
    %s188 = sphi 0, %s186
    %s189 = sphi 0, %s188
    %s203 = sphi 0, %s189
    %s211 = sphi 0, %s213
    %s214 = sphi 0, %s211
    %s215 = sphi 0, %s214
    %s231 = sphi 0, %s215
  $region4: #{bottleneck_forward.1} parent=0 // loop_header_branch
    %17 = sbr.rel (%p15) target = $region8
  $region5: #{bottleneck_forward.1} parent=0 // loop_body
    %s19 = ssub.s32 %s14, 1
    %s20 = ssub.s32 %s14, 2
    %s27 = sadd.s32 1, %s22
    %p28 = scmp.ge.s32.totalorder %s27, 2
    %s29 = scalar_select %p28, 0, %s27
    %s30 = sadd.s32 1, %s21
    %s31 = scalar_select %p28, %s30, %s21
    %p32 = scmp.ge.s32.totalorder %s31, 2
    %s33 = scalar_select %p32, 0, %s31
    %s34 = ssub.s32 %s21, %s33
    %p35 = scmp.eq.s32.totalorder %s34, 0
    %s37 = sadd.s32 %s36, 1
    %s38 = scalar_select %p35, %s36, %s37
    %p41 = pneg %p35
    %p42 = scmp.eq.s32.totalorder %s14, 3
    %p43 = por %p41, %p42
    %p44 = scmp.ne.s32.totalorder %s36, %s39
    %p45 = scmp.eq.s32.totalorder %s14, 0
    %p46 = por %p44, %p45
    %p47 = scmp.ne.s32.totalorder %s36, %s39
    %p48 = scmp.eq.s32.totalorder %s19, 3
    %p49 = por %p47, %p48
    %p50 = scmp.ne.s32.totalorder %s39, %s40
    %p51 = scmp.eq.s32.totalorder %s19, 0
    %p52 = por %p50, %p51
    %p53 = scmp.ne.s32.totalorder %s39, %s40
    %p54 = scmp.eq.s32.totalorder %s20, 3
    %p55 = por %p53, %p54
    %p57 = scmp.ne.s32.totalorder %s40, %s56
    %p58 = scmp.eq.s32.totalorder %s20, 0
    %p59 = por %p57, %p58
    %s61 = sadd.s32 %s60, 1
    %p64 = scmp.eq.s32.totalorder %s14, 3
    %p65 = scmp.ne.s32.totalorder %s60, %s62
    %p66 = scmp.eq.s32.totalorder %s14, 0
    %p67 = por %p65, %p66
    %p68 = scmp.ne.s32.totalorder %s60, %s62
    %p69 = scmp.eq.s32.totalorder %s19, 3
    %p70 = por %p68, %p69
    %p71 = scmp.ne.s32.totalorder %s62, %s63
    %p72 = scmp.eq.s32.totalorder %s19, 0
    %p73 = por %p71, %p72
    %p74 = scmp.ne.s32.totalorder %s62, %s63
    %p75 = scmp.eq.s32.totalorder %s20, 3
    %p76 = por %p74, %p75
    %p78 = scmp.ne.s32.totalorder %s63, %s77
    %p79 = scmp.eq.s32.totalorder %s20, 0
    %p80 = por %p78, %p79
    %s82 = sadd.s32 %s81, 1
    %p85 = scmp.eq.s32.totalorder %s14, 3
    %p86 = scmp.ne.s32.totalorder %s81, %s83
    %p87 = scmp.eq.s32.totalorder %s14, 0
    %p88 = por %p86, %p87
    %p89 = scmp.ne.s32.totalorder %s81, %s83
    %p90 = scmp.eq.s32.totalorder %s19, 3
    %p91 = por %p89, %p90
    %p92 = scmp.ne.s32.totalorder %s83, %s84
    %p93 = scmp.eq.s32.totalorder %s19, 0
    %p94 = por %p92, %p93
    %p95 = scmp.ne.s32.totalorder %s83, %s84
    %p96 = scmp.eq.s32.totalorder %s20, 3
    %p97 = por %p95, %p96
    %p99 = scmp.ne.s32.totalorder %s84, %s98
    %p100 = scmp.eq.s32.totalorder %s20, 0
    %p101 = por %p99, %p100
    %s103 = sadd.s32 %s102, 1
    %p106 = scmp.eq.s32.totalorder %s14, 3
    %p107 = scmp.ne.s32.totalorder %s102, %s104
    %p108 = scmp.eq.s32.totalorder %s14, 0
    %p109 = por %p107, %p108
    %p110 = scmp.ne.s32.totalorder %s102, %s104
    %p111 = scmp.eq.s32.totalorder %s19, 3
    %p112 = por %p110, %p111
    %p113 = scmp.ne.s32.totalorder %s104, %s105
    %p114 = scmp.eq.s32.totalorder %s19, 0
    %p115 = por %p113, %p114
    %p116 = scmp.ne.s32.totalorder %s104, %s105
    %p117 = scmp.eq.s32.totalorder %s20, 3
    %p118 = por %p116, %p117
    %p120 = scmp.ne.s32.totalorder %s105, %s119
    %p121 = scmp.eq.s32.totalorder %s20, 0
    %p122 = por %p120, %p121
    %s124 = sadd.s32 %s123, 1
    %p127 = scmp.eq.s32.totalorder %s14, 3
    %p128 = scmp.ne.s32.totalorder %s123, %s125
    %p129 = scmp.eq.s32.totalorder %s14, 0
    %p130 = por %p128, %p129
    %p131 = scmp.ne.s32.totalorder %s123, %s125
    %p132 = scmp.eq.s32.totalorder %s19, 3
    %p133 = por %p131, %p132
    %p134 = scmp.ne.s32.totalorder %s125, %s126
    %p135 = scmp.eq.s32.totalorder %s19, 0
    %p136 = por %p134, %p135
    %p137 = scmp.ne.s32.totalorder %s125, %s126
    %p138 = scmp.eq.s32.totalorder %s20, 3
    %p139 = por %p137, %p138
    %p141 = scmp.ne.s32.totalorder %s126, %s140
    %p142 = scmp.eq.s32.totalorder %s20, 0
    %p143 = por %p141, %p142
    %s145 = sadd.s32 %s144, 1
    %p148 = scmp.eq.s32.totalorder %s14, 3
    %p149 = scmp.ne.s32.totalorder %s144, %s146
    %p150 = scmp.eq.s32.totalorder %s14, 0
    %p151 = por %p149, %p150
    %p152 = scmp.ne.s32.totalorder %s144, %s146
    %p153 = scmp.eq.s32.totalorder %s19, 3
    %p154 = por %p152, %p153
    %p155 = scmp.ne.s32.totalorder %s146, %s147
    %p156 = scmp.eq.s32.totalorder %s19, 0
    %p157 = por %p155, %p156
    %p158 = scmp.ne.s32.totalorder %s146, %s147
    %p159 = scmp.eq.s32.totalorder %s20, 3
    %p160 = por %p158, %p159
    %p162 = scmp.ne.s32.totalorder %s147, %s161
    %p163 = scmp.eq.s32.totalorder %s20, 0
    %p164 = por %p162, %p163
    %s166 = sadd.s32 %s165, 1
    %p169 = scmp.eq.s32.totalorder %s14, 3
    %p170 = scmp.ne.s32.totalorder %s165, %s167
    %p171 = scmp.eq.s32.totalorder %s14, 0
    %p172 = por %p170, %p171
    %p173 = scmp.ne.s32.totalorder %s165, %s167
    %p174 = scmp.eq.s32.totalorder %s19, 3
    %p175 = por %p173, %p174
    %p176 = scmp.ne.s32.totalorder %s167, %s168
    %p177 = scmp.eq.s32.totalorder %s19, 0
    %p178 = por %p176, %p177
    %p179 = scmp.ne.s32.totalorder %s167, %s168
    %p180 = scmp.eq.s32.totalorder %s20, 3
    %p181 = por %p179, %p180
    %p183 = scmp.ne.s32.totalorder %s168, %s182
    %p184 = scmp.eq.s32.totalorder %s20, 0
    %p185 = por %p183, %p184
    %s187 = sadd.s32 %s186, 1
    %p190 = scmp.eq.s32.totalorder %s14, 3
    %p191 = scmp.ne.s32.totalorder %s186, %s188
    %p192 = scmp.eq.s32.totalorder %s14, 0
    %p193 = por %p191, %p192
    %p194 = scmp.ne.s32.totalorder %s186, %s188
    %p195 = scmp.eq.s32.totalorder %s19, 3
    %p196 = por %p194, %p195
    %p197 = scmp.ne.s32.totalorder %s188, %s189
    %p198 = scmp.eq.s32.totalorder %s19, 0
    %p199 = por %p197, %p198
    %p200 = scmp.ne.s32.totalorder %s188, %s189
    %p201 = scmp.eq.s32.totalorder %s20, 3
    %p202 = por %p200, %p201
    %p204 = scmp.ne.s32.totalorder %s189, %s203
    %p205 = scmp.eq.s32.totalorder %s20, 0
    %p206 = por %p204, %p205
    %s207 = ssub.s32 %s21, %s33
    %s208 = ssub.s32 %s22, %s29
    %s209 = sor.u32 %s207, %s208
    %p210 = scmp.eq.s32.totalorder %s209, 0
    %s212 = sadd.s32 %s211, 1
    %s213 = scalar_select %p210, %s211, %s212
    %p216 = pneg %p210
    %p217 = scmp.eq.s32.totalorder %s14, 3
    %p218 = por %p216, %p217
    %p219 = scmp.ne.s32.totalorder %s211, %s214
    %p220 = scmp.eq.s32.totalorder %s14, 0
    %p221 = por %p219, %p220
    %p222 = scmp.ne.s32.totalorder %s211, %s214
    %p223 = scmp.eq.s32.totalorder %s19, 3
    %p224 = por %p222, %p223
    %p225 = scmp.ne.s32.totalorder %s214, %s215
    %p226 = scmp.eq.s32.totalorder %s19, 0
    %p227 = por %p225, %p226
    %p228 = scmp.ne.s32.totalorder %s214, %s215
    %p229 = scmp.eq.s32.totalorder %s20, 3
    %p230 = por %p228, %p229
    %p232 = scmp.ne.s32.totalorder %s215, %s231
    %p233 = scmp.eq.s32.totalorder %s20, 0
    %p234 = por %p232, %p233
    %p235 = scmp.le.s32.totalorder 1, %s14
    %p236 = scmp.lt.s32.totalorder %s14, 5
    %p237 = pnand %p235, %p236
    %p238 = pneg %p237
    // Predicated region
    $region9: #{bottleneck_forward.1} parent=5 // pred_check
      _
    $region10: #{bottleneck_forward.1} parent=5 // pred_check_branch
      %240 = sbr.rel (%p237) target = $region12
    $region11: #{bottleneck_forward.1} parent=5 // pred_region
      %s241 = ssub.s32 %s14, 1
      // Predicated region
      $region13: #{bottleneck_forward.1} parent=11 // pred_check
        %p242 = pneg %p73
      $region14: #{bottleneck_forward.1} parent=11 // pred_check_branch
        %244 = sbr.rel (%p242) target = $region16
      $region15: #{bottleneck_forward.1} parent=11 // pred_region
        _
      $region16: #{bottleneck_forward.1} parent=11 // pred_fallthru
        _
      // Predicated region
      $region17: #{bottleneck_forward.1} parent=11 // pred_check
        %p245 = pneg %p94
      $region18: #{bottleneck_forward.1} parent=11 // pred_check_branch
        %247 = sbr.rel (%p245) target = $region20
      $region19: #{bottleneck_forward.1} parent=11 // pred_region
        _
      $region20: #{bottleneck_forward.1} parent=11 // pred_fallthru
        _
      // Predicated region
      $region21: #{bottleneck_forward.1} parent=11 // pred_check
        %p248 = pneg %p115
      $region22: #{bottleneck_forward.1} parent=11 // pred_check_branch
        %250 = sbr.rel (%p248) target = $region24
      $region23: #{bottleneck_forward.1} parent=11 // pred_region
        _
      $region24: #{bottleneck_forward.1} parent=11 // pred_fallthru
        _
      // Predicated region
      $region25: #{bottleneck_forward.1} parent=11 // pred_check
        %p251 = pneg %p136
      $region26: #{bottleneck_forward.1} parent=11 // pred_check_branch
        %253 = sbr.rel (%p251) target = $region28
      $region27: #{bottleneck_forward.1} parent=11 // pred_region
        _
      $region28: #{bottleneck_forward.1} parent=11 // pred_fallthru
        _
      // Predicated region
      $region29: #{bottleneck_forward.1} parent=11 // pred_check
        %p254 = pneg %p157
      $region30: #{bottleneck_forward.1} parent=11 // pred_check_branch
        %256 = sbr.rel (%p254) target = $region32
      $region31: #{bottleneck_forward.1} parent=11 // pred_region
        _
      $region32: #{bottleneck_forward.1} parent=11 // pred_fallthru
        _
      // Predicated region
      $region33: #{bottleneck_forward.1} parent=11 // pred_check
        %p257 = pneg %p178
      $region34: #{bottleneck_forward.1} parent=11 // pred_check_branch
        %259 = sbr.rel (%p257) target = $region36
      $region35: #{bottleneck_forward.1} parent=11 // pred_region
        _
      $region36: #{bottleneck_forward.1} parent=11 // pred_fallthru
        _
      // Predicated region
      $region37: #{bottleneck_forward.1} parent=11 // pred_check
        %p260 = pneg %p199
      $region38: #{bottleneck_forward.1} parent=11 // pred_check_branch
        %262 = sbr.rel (%p260) target = $region40
      $region39: #{bottleneck_forward.1} parent=11 // pred_region
        _
      $region40: #{bottleneck_forward.1} parent=11 // pred_fallthru
        _
    $region12: #{bottleneck_forward.1} parent=5 // pred_fallthru
      _
    %p263 = scmp.lt.s32.totalorder %s14, 4
    // Predicated region
    $region41: #{bottleneck_forward.1} parent=5 // pred_check
      %p264 = pneg %p263
    $region42: #{bottleneck_forward.1} parent=5 // pred_check_branch
      %266 = sbr.rel (%p264) target = $region44
    $region43: #{bottleneck_forward.1} parent=5 // pred_region
      // Predicated region
      $region45: #{bottleneck_forward.1} parent=43 // pred_check
        %p267 = pneg %p46
      $region46: #{bottleneck_forward.1} parent=43 // pred_check_branch
        %269 = sbr.rel (%p267) target = $region48
      $region47: #{bottleneck_forward.1} parent=43 // pred_region
        %p270 = scmp.lt.s32.totalorder %s21, 1
        %s271 = scalar_select %p270, %s21, 1
        %s272 = smul.addr %s271, 32
        %s273 = smul.addr %s272, 4
        %s274 = scalar_lea.vmem %s0, %s273
      $region48: #{bottleneck_forward.1} parent=43 // pred_fallthru
        _
    $region44: #{bottleneck_forward.1} parent=5 // pred_fallthru
      _
    %p275 = scmp.le.s32.totalorder 1, %s14
    %p276 = scmp.lt.s32.totalorder %s14, 5
    %p277 = pnand %p275, %p276
    %p278 = pneg %p277
    // Predicated region
    $region49: #{bottleneck_forward.1} parent=5 // pred_check
      _
    $region50: #{bottleneck_forward.1} parent=5 // pred_check_branch
      %280 = sbr.rel (%p277) target = $region52
    $region51: #{bottleneck_forward.1} parent=5 // pred_region
      %s281 = ssub.s32 %s14, 1
      %p282 = scmp.lt.s32.totalorder %s23, 1
      %s283 = scalar_select %p282, %s23, 1
      %s284 = smul.addr %s283, 32
      %s285 = smul.addr %s284, 4
      %s286 = scalar_lea.vmem %s0, %s285
      %p287 = pneg %p52
      %p288 = pneg %p49
      %p289 = pneg %p73
      %p290 = pneg %p70
      %p291 = pneg %p94
      %p292 = pneg %p91
      %p293 = pneg %p115
      %p294 = pneg %p112
      %p295 = pneg %p136
      %p296 = pneg %p133
      %p297 = pneg %p157
      %p298 = pneg %p154
      %p299 = pneg %p178
      %p300 = pneg %p175
      %p301 = pneg %p199
      %p302 = pneg %p196
      %p303 = pneg %p227
      %p304 = pneg %p224
      %s305 = smul.u32 8, %s24
      %p306 = scmp.lt.s32.totalorder %s23, 1
      %s307 = scalar_select %p306, %s23, 1
      %p308 = scmp.lt.s32.totalorder %s305, 15
      %s309 = scalar_select %p308, %s305, 15
      %s310 = smul.addr %s309, 2
      %s311 = smul.addr %s307, 32
      %s312 = sadd.s32 %s310, %s311
      %s313 = smul.addr %s312, 4
      %s314 = scalar_lea.vmem %s8, %s313
      %p315 = scmp.lt.s32.totalorder %s23, 1
      %s316 = scalar_select %p315, %s23, 1
      %s317 = smul.addr %s316, 32
      %s318 = smul.addr %s317, 4
      %s319 = scalar_lea.vmem %s0, %s318
      %s320 = smul.u32 8, %s24
      %p321 = scmp.lt.s32.totalorder %s23, 1
      %s322 = scalar_select %p321, %s23, 1
      %p323 = scmp.lt.s32.totalorder %s320, 15
      %s324 = scalar_select %p323, %s320, 15
      %s325 = smul.addr %s324, 2
      %s326 = smul.addr %s322, 32
      %s327 = sadd.s32 %s325, %s326
      %s328 = smul.addr %s327, 4
      %s329 = scalar_lea.vmem %s8, %s328
      %s330 = smul.u32 8, %s24
      %s332 = smul.u32 %s24, 8
      %s333 = smul.u32 %s332, 2
      %s334 = smul.addr %s333, 4
      %s335 = scalar_lea.vmem %s319, %s334
      %v336 = vld [vmem:[%s335] sm:$0xf]
      %v337 = vld [vmem:[%s335 + $0x4] sm:$0xf]
      %v338 = vld [vmem:[%s335 + $0x8] sm:$0xf]
      %v339 = vld [vmem:[%s335 + $0xc] sm:$0xf]
      %v340 = vld [vmem:[%s335 + $0x10] sm:$0xf]
      %v341 = vld [vmem:[%s335 + $0x14] sm:$0xf]
      %v342 = vld [vmem:[%s335 + $0x18] sm:$0xf]
      %v343 = vld [vmem:[%s335 + $0x1c] sm:$0xf]
      %v344 = vld [vmem:[%s335 + $0x20] sm:$0xf]
      %v345 = vld [vmem:[%s335 + $0x24] sm:$0xf]
      %v346 = vld [vmem:[%s335 + $0x28] sm:$0xf]
      %v347 = vld [vmem:[%s335 + $0x2c] sm:$0xf]
      %v348 = vld [vmem:[%s335 + $0x30] sm:$0xf]
      %v349 = vld [vmem:[%s335 + $0x34] sm:$0xf]
      %v350 = vld [vmem:[%s335 + $0x38] sm:$0xf]
      %v351 = vld [vmem:[%s335 + $0x3c] sm:$0xf]
      %v352 = vld [vmem:[%s1] sm:$0xf]
      %v353 = vld [vmem:[%s1 + $0x4] sm:$0xf]
      %v354 = vld [vmem:[%s1 + $0x8] sm:$0xf]
      %v355 = vld [vmem:[%s1 + $0xc] sm:$0xf]
      %v356 = vld [vmem:[%s1 + $0x10] sm:$0xf]
      %v357 = vld [vmem:[%s1 + $0x14] sm:$0xf]
      %v358 = vld [vmem:[%s1 + $0x18] sm:$0xf]
      %v359 = vld [vmem:[%s1 + $0x1c] sm:$0xf]
      %v360 = vld [vmem:[%s1 + $0x20] sm:$0xf]
      %v361 = vld [vmem:[%s1 + $0x24] sm:$0xf]
      %v362 = vld [vmem:[%s1 + $0x28] sm:$0xf]
      %v363 = vld [vmem:[%s1 + $0x2c] sm:$0xf]
      %v364 = vld [vmem:[%s1 + $0x30] sm:$0xf]
      %v365 = vld [vmem:[%s1 + $0x34] sm:$0xf]
      %v366 = vld [vmem:[%s1 + $0x38] sm:$0xf]
      %v367 = vld [vmem:[%s1 + $0x3c] sm:$0xf]
      %v368 = vld [vmem:[%s2] sm:$0x1]
      %v370 = vlaneseq
      %v371 = vshrl.u32 %v370, 7
      %v372 = vsub.s32 0, %v371
      %v373 = vrot.slane %v368, %v372
      %v391 = vunpack.c.l.b16 %v336
      %v392 = vunpack.c.l.b16 %v337
      %v393 = vunpack.c.l.b16 %v338
      %v394 = vunpack.c.l.b16 %v339
      %v395 = vunpack.c.l.b16 %v340
      %v396 = vunpack.c.l.b16 %v341
      %v397 = vunpack.c.l.b16 %v342
      %v398 = vunpack.c.l.b16 %v343
      %v399 = vunpack.c.l.b16 %v344
      %v400 = vunpack.c.l.b16 %v345
      %v401 = vunpack.c.l.b16 %v346
      %v402 = vunpack.c.l.b16 %v347
      %v403 = vunpack.c.l.b16 %v348
      %v404 = vunpack.c.l.b16 %v349
      %v405 = vunpack.c.l.b16 %v350
      %v406 = vunpack.c.l.b16 %v351
      %v407 = vpack.c.b16 %v392, %v391
      %v408 = vpack.c.b16 %v394, %v393
      %v409 = vpack.c.b16 %v396, %v395
      %v410 = vpack.c.b16 %v398, %v397
      %v411 = vpack.c.b16 %v400, %v399
      %v412 = vpack.c.b16 %v402, %v401
      %v413 = vpack.c.b16 %v404, %v403
      %v414 = vpack.c.b16 %v406, %v405
      %v439 = vunpack.c.l.b16 %v352
      %v440 = vunpack.c.l.b16 %v353
      %v441 = vunpack.c.l.b16 %v354
      %v442 = vunpack.c.l.b16 %v355
      %v443 = vunpack.c.l.b16 %v356
      %v444 = vunpack.c.l.b16 %v357
      %v445 = vunpack.c.l.b16 %v358
      %v446 = vunpack.c.l.b16 %v359
      %v447 = vunpack.c.l.b16 %v360
      %v448 = vunpack.c.l.b16 %v361
      %v449 = vunpack.c.l.b16 %v362
      %v450 = vunpack.c.l.b16 %v363
      %v451 = vunpack.c.l.b16 %v364
      %v452 = vunpack.c.l.b16 %v365
      %v453 = vunpack.c.l.b16 %v366
      %v454 = vunpack.c.l.b16 %v367
      %v455 = vpack.c.b16 %v440, %v439
      %v456 = vpack.c.b16 %v442, %v441
      %v457 = vpack.c.b16 %v444, %v443
      %v458 = vpack.c.b16 %v446, %v445
      %v459 = vpack.c.b16 %v448, %v447
      %v460 = vpack.c.b16 %v450, %v449
      %v461 = vpack.c.b16 %v452, %v451
      %v462 = vpack.c.b16 %v454, %v453
      %471 = vmatprep.subr.bf16.mxu0 0
      %472 = vmatpush1.bf16.msra.mxu0 %v455
      %473 = vmatprep.subr.bf16.mxu0 0
      %474 = vmatpush1.bf16.msra.mxu0 %v456
      %475 = vmatprep.subr.bf16.mxu0 0
      %476 = vmatpush1.bf16.msra.mxu0 %v457
      %477 = vmatprep.subr.bf16.mxu0 0
      %478 = vmatpush1.bf16.msra.mxu0 %v458
      %479 = vmatprep.subr.bf16.mxu0 0
      %480 = vmatpush1.bf16.msra.mxu0 %v459
      %481 = vmatprep.subr.bf16.mxu0 0
      %482 = vmatpush1.bf16.msra.mxu0 %v460
      %483 = vmatprep.subr.bf16.mxu0 0
      %484 = vmatpush1.bf16.msra.mxu0 %v461
      %485 = vmatprep.subr.bf16.mxu0 0
      %486 = vmatpush1.bf16.msra.mxu0 %v462
      %487 = vmatprep.subr.bf16.mxu0 0
      %488 = vmatpush1.bf16.msra.mxu0 0
      %489 = vmatprep.subr.bf16.mxu0 0
      %490 = vmatpush1.bf16.msra.mxu0 0
      %491 = vmatprep.subr.bf16.mxu0 0
      %492 = vmatpush1.bf16.msra.mxu0 0
      %493 = vmatprep.subr.bf16.mxu0 0
      %494 = vmatpush1.bf16.msra.mxu0 0
      %495 = vmatprep.subr.bf16.mxu0 0
      %496 = vmatpush1.bf16.msra.mxu0 0
      %497 = vmatprep.subr.bf16.mxu0 0
      %498 = vmatpush1.bf16.msra.mxu0 0
      %499 = vmatprep.subr.bf16.mxu0 0
      %500 = vmatpush1.bf16.msra.mxu0 0
      %501 = vmatprep.subr.bf16.mxu0 0
      %502 = vmatpush1.bf16.msra.mxu0 0
      %503 = vmatprep.mubr.bf16.mxu0 0
      %504 = vmatmul.mubr.bf16.gmra.mrb[0].mxu0 %v407
      %v505 = vpop.f32.mrb[0].mxu0
      %v506 = vadd.f32 %v373, %v505
      %v507 = vpop.f32.mrb[0].mxu0
      %v508 = vpop.f32.mrb[0].mxu0
      %v509 = vadd.f32 %v373, %v508
      %v510 = vpop.f32.mrb[0].mxu0
      %511 = vmatprep.mubr.bf16.mxu0 0
      %512 = vmatmul.mubr.bf16.gmra.mrb[0].mxu0 %v408
      %v513 = vpop.f32.mrb[0].mxu0
      %v514 = vadd.f32 %v373, %v513
      %v515 = vpop.f32.mrb[0].mxu0
      %v516 = vpop.f32.mrb[0].mxu0
      %v517 = vadd.f32 %v373, %v516
      %v518 = vpop.f32.mrb[0].mxu0
      %519 = vmatprep.mubr.bf16.mxu0 0
      %520 = vmatmul.mubr.bf16.gmra.mrb[0].mxu0 %v409
      %v521 = vpop.f32.mrb[0].mxu0
      %v522 = vadd.f32 %v373, %v521
      %v523 = vpop.f32.mrb[0].mxu0
      %v524 = vpop.f32.mrb[0].mxu0
      %v525 = vadd.f32 %v373, %v524
      %v526 = vpop.f32.mrb[0].mxu0
      %527 = vmatprep.mubr.bf16.mxu0 0
      %528 = vmatmul.mubr.bf16.gmra.mrb[0].mxu0 %v410
      %v529 = vpop.f32.mrb[0].mxu0
      %v530 = vadd.f32 %v373, %v529
      %v531 = vpop.f32.mrb[0].mxu0
      %v532 = vpop.f32.mrb[0].mxu0
      %v533 = vadd.f32 %v373, %v532
      %v534 = vpop.f32.mrb[0].mxu0
      %535 = vmatprep.mubr.bf16.mxu0 0
      %536 = vmatmul.mubr.bf16.gmra.mrb[0].mxu0 %v411
      %v537 = vpop.f32.mrb[0].mxu0
      %v538 = vadd.f32 %v373, %v537
      %v539 = vpop.f32.mrb[0].mxu0
      %v540 = vpop.f32.mrb[0].mxu0
      %v541 = vadd.f32 %v373, %v540
      %v542 = vpop.f32.mrb[0].mxu0
      %543 = vmatprep.mubr.bf16.mxu0 0
      %544 = vmatmul.mubr.bf16.gmra.mrb[0].mxu0 %v412
      %v545 = vpop.f32.mrb[0].mxu0
      %v546 = vadd.f32 %v373, %v545
      %v547 = vpop.f32.mrb[0].mxu0
      %v548 = vpop.f32.mrb[0].mxu0
      %v549 = vadd.f32 %v373, %v548
      %v550 = vpop.f32.mrb[0].mxu0
      %551 = vmatprep.mubr.bf16.mxu0 0
      %552 = vmatmul.mubr.bf16.gmra.mrb[0].mxu0 %v413
      %v553 = vpop.f32.mrb[0].mxu0
      %v554 = vadd.f32 %v373, %v553
      %v555 = vpop.f32.mrb[0].mxu0
      %v556 = vpop.f32.mrb[0].mxu0
      %v557 = vadd.f32 %v373, %v556
      %v558 = vpop.f32.mrb[0].mxu0
      %559 = vmatprep.mubr.bf16.mxu0 0
      %560 = vmatmul.mubr.bf16.gmra.mrb[0].mxu0 %v414
      %v561 = vpop.f32.mrb[0].mxu0
      %v562 = vadd.f32 %v373, %v561
      %v563 = vpop.f32.mrb[0].mxu0
      %v564 = vpop.f32.mrb[0].mxu0
      %v565 = vadd.f32 %v373, %v564
      %v566 = vpop.f32.mrb[0].mxu0
      %567 = vdwg.mxu0
      %v568 = vmax.f32 %v506, 0.0
      %v569 = vmax.f32 %v509, 0.0
      %v570 = vmax.f32 %v514, 0.0
      %v571 = vmax.f32 %v517, 0.0
      %v572 = vmax.f32 %v522, 0.0
      %v573 = vmax.f32 %v525, 0.0
      %v574 = vmax.f32 %v530, 0.0
      %v575 = vmax.f32 %v533, 0.0
      %v576 = vmax.f32 %v538, 0.0
      %v577 = vmax.f32 %v541, 0.0
      %v578 = vmax.f32 %v546, 0.0
      %v579 = vmax.f32 %v549, 0.0
      %v580 = vmax.f32 %v554, 0.0
      %v581 = vmax.f32 %v557, 0.0
      %v582 = vmax.f32 %v562, 0.0
      %v583 = vmax.f32 %v565, 0.0
      %v584 = vpack.c.bf16 %v569, %v568
      %v585 = vpack.c.bf16 %v571, %v570
      %v586 = vpack.c.bf16 %v573, %v572
      %v587 = vpack.c.bf16 %v575, %v574
      %v588 = vpack.c.bf16 %v577, %v576
      %v589 = vpack.c.bf16 %v579, %v578
      %v590 = vpack.c.bf16 %v581, %v580
      %v591 = vpack.c.bf16 %v583, %v582
      %s592 = scalar_lea.vmem [#allocation2], 8
      %593 = vst [vmem:[%s592] sm:$0xff] %v584
      %594 = vst [vmem:[%s592 + $0x8] sm:$0xff] %v585
      %595 = vst [vmem:[%s592 + $0x10] sm:$0xff] %v586
      %596 = vst [vmem:[%s592 + $0x18] sm:$0xff] %v587
      %597 = vst [vmem:[%s592 + $0x20] sm:$0xff] %v588
      %598 = vst [vmem:[%s592 + $0x28] sm:$0xff] %v589
      %599 = vst [vmem:[%s592 + $0x30] sm:$0xff] %v590
      %600 = vst [vmem:[%s592 + $0x38] sm:$0xff] %v591
      %s601 = ssub.s32 %s332, 1
      %p602 = scmp.gt.s32.totalorder %s601, 0
      %s603 = scalar_select %p602, %s601, 0
      %s604 = smul.u32 %s603, 2
      %s605 = smul.addr %s604, 4
      %s606 = scalar_lea.vmem %s319, %s605
      %v607 = vld [vmem:[%s606] sm:$0xf]
      %v608 = vld [vmem:[%s606 + $0x4] sm:$0xf]
      %v609 = vld [vmem:[%s1] sm:$0xf]
      %v610 = vld [vmem:[%s1 + $0x4] sm:$0xf]
      %v611 = vld [vmem:[%s1 + $0x8] sm:$0xf]
      %v612 = vld [vmem:[%s1 + $0xc] sm:$0xf]
      %v613 = vld [vmem:[%s1 + $0x10] sm:$0xf]
      %v614 = vld [vmem:[%s1 + $0x14] sm:$0xf]
      %v615 = vld [vmem:[%s1 + $0x18] sm:$0xf]
      %v616 = vld [vmem:[%s1 + $0x1c] sm:$0xf]
      %v617 = vld [vmem:[%s1 + $0x20] sm:$0xf]
      %v618 = vld [vmem:[%s1 + $0x24] sm:$0xf]
      %v619 = vld [vmem:[%s1 + $0x28] sm:$0xf]
      %v620 = vld [vmem:[%s1 + $0x2c] sm:$0xf]
      %v621 = vld [vmem:[%s1 + $0x30] sm:$0xf]
      %v622 = vld [vmem:[%s1 + $0x34] sm:$0xf]
      %v623 = vld [vmem:[%s1 + $0x38] sm:$0xf]
      %v624 = vld [vmem:[%s1 + $0x3c] sm:$0xf]
      %v625 = vld [vmem:[%s2] sm:$0x1]
      %v627 = vlaneseq
      %v628 = vshrl.u32 %v627, 7
      %v629 = vsub.s32 0, %v628
      %v630 = vrot.slane %v625, %v629
      %v634 = vunpack.c.l.b16 %v607
      %v635 = vunpack.c.l.b16 %v608
      %v636 = vpack.c.b16 %v635, %v634
      %v654 = vunpack.c.l.b16 %v609
      %v655 = vunpack.c.l.b16 %v610
      %v656 = vunpack.c.l.b16 %v611
      %v657 = vunpack.c.l.b16 %v612
      %v658 = vunpack.c.l.b16 %v613
      %v659 = vunpack.c.l.b16 %v614
      %v660 = vunpack.c.l.b16 %v615
      %v661 = vunpack.c.l.b16 %v616
      %v662 = vunpack.c.l.b16 %v617
      %v663 = vunpack.c.l.b16 %v618
      %v664 = vunpack.c.l.b16 %v619
      %v665 = vunpack.c.l.b16 %v620
      %v666 = vunpack.c.l.b16 %v621
      %v667 = vunpack.c.l.b16 %v622
      %v668 = vunpack.c.l.b16 %v623
      %v669 = vunpack.c.l.b16 %v624
      %v670 = vpack.c.b16 %v655, %v654
      %v671 = vpack.c.b16 %v657, %v656
      %v672 = vpack.c.b16 %v659, %v658
      %v673 = vpack.c.b16 %v661, %v660
      %v674 = vpack.c.b16 %v663, %v662
      %v675 = vpack.c.b16 %v665, %v664
      %v676 = vpack.c.b16 %v667, %v666
      %v677 = vpack.c.b16 %v669, %v668
      %686 = vmatprep.subr.bf16.mxu0 0
      %687 = vmatpush1.bf16.msra.mxu0 %v670
      %688 = vmatprep.subr.bf16.mxu0 0
      %689 = vmatpush1.bf16.msra.mxu0 %v671
      %690 = vmatprep.subr.bf16.mxu0 0
      %691 = vmatpush1.bf16.msra.mxu0 %v672
      %692 = vmatprep.subr.bf16.mxu0 0
      %693 = vmatpush1.bf16.msra.mxu0 %v673
      %694 = vmatprep.subr.bf16.mxu0 0
      %695 = vmatpush1.bf16.msra.mxu0 %v674
      %696 = vmatprep.subr.bf16.mxu0 0
      %697 = vmatpush1.bf16.msra.mxu0 %v675
      %698 = vmatprep.subr.bf16.mxu0 0
      %699 = vmatpush1.bf16.msra.mxu0 %v676
      %700 = vmatprep.subr.bf16.mxu0 0
      %701 = vmatpush1.bf16.msra.mxu0 %v677
      %702 = vmatprep.subr.bf16.mxu0 0
      %703 = vmatpush1.bf16.msra.mxu0 0
      %704 = vmatprep.subr.bf16.mxu0 0
      %705 = vmatpush1.bf16.msra.mxu0 0
      %706 = vmatprep.subr.bf16.mxu0 0
      %707 = vmatpush1.bf16.msra.mxu0 0
      %708 = vmatprep.subr.bf16.mxu0 0
      %709 = vmatpush1.bf16.msra.mxu0 0
      %710 = vmatprep.subr.bf16.mxu0 0
      %711 = vmatpush1.bf16.msra.mxu0 0
      %712 = vmatprep.subr.bf16.mxu0 0
      %713 = vmatpush1.bf16.msra.mxu0 0
      %714 = vmatprep.subr.bf16.mxu0 0
      %715 = vmatpush1.bf16.msra.mxu0 0
      %716 = vmatprep.subr.bf16.mxu0 0
      %717 = vmatpush1.bf16.msra.mxu0 0
      %718 = vmatprep.mubr.bf16.mxu0 0
      %719 = vmatmul.mubr.bf16.gmra.mrb[0].mxu0 %v636
      %v720 = vpop.f32.mrb[0].mxu0
      %v721 = vadd.f32 %v630, %v720
      %v722 = vpop.f32.mrb[0].mxu0
      %v723 = vpop.f32.mrb[0].mxu0
      %v724 = vadd.f32 %v630, %v723
      %v725 = vpop.f32.mrb[0].mxu0
      %726 = vdwg.mxu0
      %v727 = vmax.f32 %v721, 0.0
      %v728 = vmax.f32 %v724, 0.0
      %p729 = scmp.gt.s32.totalorder %s24, 0
      %s730 = scalar_select %p729, 1, 0
      %s731 = scvt.s32.f32 %s730
      %v732 = vstv %s731
      %v733 = vmul.f32 %v727, %v732
      %v734 = vmul.f32 %v728, %v732
      %v735 = vpack.c.bf16 %v734, %v733
      %736 = vst [vmem:[#allocation2] sm:$0xff] %v735
      %s737 = sadd.s32 %s332, 8
      %p738 = scmp.lt.s32.totalorder %s737, 15
      %s739 = scalar_select %p738, %s737, 15
      %s740 = smul.u32 %s739, 2
      %s741 = smul.addr %s740, 4
      %s742 = scalar_lea.vmem %s319, %s741
      %v743 = vld [vmem:[%s742] sm:$0xf]
      %v744 = vld [vmem:[%s742 + $0x4] sm:$0xf]
      %v745 = vld [vmem:[%s1] sm:$0xf]
      %v746 = vld [vmem:[%s1 + $0x4] sm:$0xf]
      %v747 = vld [vmem:[%s1 + $0x8] sm:$0xf]
      %v748 = vld [vmem:[%s1 + $0xc] sm:$0xf]
      %v749 = vld [vmem:[%s1 + $0x10] sm:$0xf]
      %v750 = vld [vmem:[%s1 + $0x14] sm:$0xf]
      %v751 = vld [vmem:[%s1 + $0x18] sm:$0xf]
      %v752 = vld [vmem:[%s1 + $0x1c] sm:$0xf]
      %v753 = vld [vmem:[%s1 + $0x20] sm:$0xf]
      %v754 = vld [vmem:[%s1 + $0x24] sm:$0xf]
      %v755 = vld [vmem:[%s1 + $0x28] sm:$0xf]
      %v756 = vld [vmem:[%s1 + $0x2c] sm:$0xf]
      %v757 = vld [vmem:[%s1 + $0x30] sm:$0xf]
      %v758 = vld [vmem:[%s1 + $0x34] sm:$0xf]
      %v759 = vld [vmem:[%s1 + $0x38] sm:$0xf]
      %v760 = vld [vmem:[%s1 + $0x3c] sm:$0xf]
      %v761 = vld [vmem:[%s2] sm:$0x1]
      %v763 = vlaneseq
      %v764 = vshrl.u32 %v763, 7
      %v765 = vsub.s32 0, %v764
      %v766 = vrot.slane %v761, %v765
      %v770 = vunpack.c.l.b16 %v743
      %v771 = vunpack.c.l.b16 %v744
      %v772 = vpack.c.b16 %v771, %v770
      %v790 = vunpack.c.l.b16 %v745
      %v791 = vunpack.c.l.b16 %v746
      %v792 = vunpack.c.l.b16 %v747
      %v793 = vunpack.c.l.b16 %v748
      %v794 = vunpack.c.l.b16 %v749
      %v795 = vunpack.c.l.b16 %v750
      %v796 = vunpack.c.l.b16 %v751
      %v797 = vunpack.c.l.b16 %v752
      %v798 = vunpack.c.l.b16 %v753
      %v799 = vunpack.c.l.b16 %v754
      %v800 = vunpack.c.l.b16 %v755
      %v801 = vunpack.c.l.b16 %v756
      %v802 = vunpack.c.l.b16 %v757
      %v803 = vunpack.c.l.b16 %v758
      %v804 = vunpack.c.l.b16 %v759
      %v805 = vunpack.c.l.b16 %v760
      %v806 = vpack.c.b16 %v791, %v790
      %v807 = vpack.c.b16 %v793, %v792
      %v808 = vpack.c.b16 %v795, %v794
      %v809 = vpack.c.b16 %v797, %v796
      %v810 = vpack.c.b16 %v799, %v798
      %v811 = vpack.c.b16 %v801, %v800
      %v812 = vpack.c.b16 %v803, %v802
      %v813 = vpack.c.b16 %v805, %v804
      %822 = vmatprep.subr.bf16.mxu0 0
      %823 = vmatpush1.bf16.msra.mxu0 %v806
      %824 = vmatprep.subr.bf16.mxu0 0
      %825 = vmatpush1.bf16.msra.mxu0 %v807
      %826 = vmatprep.subr.bf16.mxu0 0
      %827 = vmatpush1.bf16.msra.mxu0 %v808
      %828 = vmatprep.subr.bf16.mxu0 0
      %829 = vmatpush1.bf16.msra.mxu0 %v809
      %830 = vmatprep.subr.bf16.mxu0 0
      %831 = vmatpush1.bf16.msra.mxu0 %v810
      %832 = vmatprep.subr.bf16.mxu0 0
      %833 = vmatpush1.bf16.msra.mxu0 %v811
      %834 = vmatprep.subr.bf16.mxu0 0
      %835 = vmatpush1.bf16.msra.mxu0 %v812
      %836 = vmatprep.subr.bf16.mxu0 0
      %837 = vmatpush1.bf16.msra.mxu0 %v813
      %838 = vmatprep.subr.bf16.mxu0 0
      %839 = vmatpush1.bf16.msra.mxu0 0
      %840 = vmatprep.subr.bf16.mxu0 0
      %841 = vmatpush1.bf16.msra.mxu0 0
      %842 = vmatprep.subr.bf16.mxu0 0
      %843 = vmatpush1.bf16.msra.mxu0 0
      %844 = vmatprep.subr.bf16.mxu0 0
      %845 = vmatpush1.bf16.msra.mxu0 0
      %846 = vmatprep.subr.bf16.mxu0 0
      %847 = vmatpush1.bf16.msra.mxu0 0
      %848 = vmatprep.subr.bf16.mxu0 0
      %849 = vmatpush1.bf16.msra.mxu0 0
      %850 = vmatprep.subr.bf16.mxu0 0
      %851 = vmatpush1.bf16.msra.mxu0 0
      %852 = vmatprep.subr.bf16.mxu0 0
      %853 = vmatpush1.bf16.msra.mxu0 0
      %854 = vmatprep.mubr.bf16.mxu0 0
      %855 = vmatmul.mubr.bf16.gmra.mrb[0].mxu0 %v772
      %v856 = vpop.f32.mrb[0].mxu0
      %v857 = vadd.f32 %v766, %v856
      %v858 = vpop.f32.mrb[0].mxu0
      %v859 = vpop.f32.mrb[0].mxu0
      %v860 = vadd.f32 %v766, %v859
      %v861 = vpop.f32.mrb[0].mxu0
      %862 = vdwg.mxu0
      %v863 = vmax.f32 %v857, 0.0
      %v864 = vmax.f32 %v860, 0.0
      %p865 = scmp.lt.s32.totalorder %s24, 1
      %s866 = scalar_select %p865, 1, 0
      %s867 = scvt.s32.f32 %s866
      %v868 = vstv %s867
      %v869 = vmul.f32 %v863, %v868
      %v870 = vmul.f32 %v864, %v868
      %v871 = vpack.c.bf16 %v870, %v869
      %s872 = scalar_lea.vmem [#allocation2], 72
      %873 = vst [vmem:[%s872] sm:$0xff] %v871
      %v874 = vld [vmem:[#allocation2] sm:$0xff]
      %v875 = vld [vmem:[#allocation2 + $0x8] sm:$0xff]
      %v876 = vld [vmem:[#allocation2 + $0x10] sm:$0xff]
      %v877 = vld [vmem:[#allocation2 + $0x18] sm:$0xff]
      %v878 = vld [vmem:[#allocation2 + $0x20] sm:$0xff]
      %v879 = vld [vmem:[#allocation2 + $0x28] sm:$0xff]
      %v880 = vld [vmem:[#allocation2 + $0x30] sm:$0xff]
      %v881 = vld [vmem:[#allocation2 + $0x38] sm:$0xff]
      %v882 = vld [vmem:[#allocation2 + $0x40] sm:$0xff]
      %v883 = vld [vmem:[#allocation2 + $0x48] sm:$0xff]
      %v885 = vshrl.u32 %v874, 16
      %v887 = vrot.slane %v885, 7
      %v888 = vshll.u32 %v874, 16
      %v890 = vor.u32 %v887, %v888
      %v892 = vshrl.u32 %v875, 16
      %v894 = vrot.slane %v892, 7
      %v895 = vshll.u32 %v875, 16
      %v897 = vor.u32 %v894, %v895
      %v899 = vshrl.u32 %v876, 16
      %v901 = vrot.slane %v899, 7
      %v902 = vshll.u32 %v876, 16
      %v904 = vor.u32 %v901, %v902
      %v906 = vshrl.u32 %v877, 16
      %v908 = vrot.slane %v906, 7
      %v909 = vshll.u32 %v877, 16
      %v911 = vor.u32 %v908, %v909
      %v913 = vshrl.u32 %v878, 16
      %v915 = vrot.slane %v913, 7
      %v916 = vshll.u32 %v878, 16
      %v918 = vor.u32 %v915, %v916
      %v920 = vshrl.u32 %v879, 16
      %v922 = vrot.slane %v920, 7
      %v923 = vshll.u32 %v879, 16
      %v925 = vor.u32 %v922, %v923
      %v927 = vshrl.u32 %v880, 16
      %v929 = vrot.slane %v927, 7
      %v930 = vshll.u32 %v880, 16
      %v932 = vor.u32 %v929, %v930
      %v934 = vshrl.u32 %v881, 16
      %v936 = vrot.slane %v934, 7
      %v937 = vshll.u32 %v881, 16
      %v939 = vor.u32 %v936, %v937
      %v941 = vshrl.u32 %v882, 16
      %v943 = vrot.slane %v941, 7
      %v944 = vshll.u32 %v882, 16
      %v946 = vor.u32 %v943, %v944
      %v948 = vshrl.u32 %v883, 16
      %v950 = vrot.slane %v948, 7
      %v951 = vshll.u32 %v883, 16
      %v953 = vor.u32 %v950, %v951
      %vm964 = vcmask 1040384
      %vm965 = vsmask.f32 256
      %vm966 = vmand %vm964, %vm965
      %v967 = vsel %vm966, 0, %v890
      %v968 = vsel %vm966, 0, %v897
      %v969 = vsel %vm966, 0, %v904
      %v970 = vsel %vm966, 0, %v911
      %v971 = vsel %vm966, 0, %v918
      %v972 = vsel %vm966, 0, %v925
      %v973 = vsel %vm966, 0, %v932
      %v974 = vsel %vm966, 0, %v939
      %v975 = vsel %vm966, 0, %v946
      %v976 = vsel %vm966, 0, %v953
      %v977 = vrot.slane %v888, 1
      %v978 = vor.u32 %v885, %v977
      %v979 = vrot.slane %v895, 1
      %v980 = vor.u32 %v892, %v979
      %v981 = vrot.slane %v902, 1
      %v982 = vor.u32 %v899, %v981
      %v983 = vrot.slane %v909, 1
      %v984 = vor.u32 %v906, %v983
      %v985 = vrot.slane %v916, 1
      %v986 = vor.u32 %v913, %v985
      %v987 = vrot.slane %v923, 1
      %v988 = vor.u32 %v920, %v987
      %v989 = vrot.slane %v930, 1
      %v990 = vor.u32 %v927, %v989
      %v991 = vrot.slane %v937, 1
      %v992 = vor.u32 %v934, %v991
      %v993 = vrot.slane %v944, 1
      %v994 = vor.u32 %v941, %v993
      %v995 = vrot.slane %v951, 1
      %v996 = vor.u32 %v948, %v995
      %vm1007 = vcmask 1047552
      %vm1008 = vsmask.f32 7424
      %vm1009 = vmand %vm1007, %vm1008
      %v1010 = vsel %vm1009, %v978, 0
      %v1011 = vsel %vm1009, %v980, 0
      %v1012 = vsel %vm1009, %v982, 0
      %v1013 = vsel %vm1009, %v984, 0
      %v1014 = vsel %vm1009, %v986, 0
      %v1015 = vsel %vm1009, %v988, 0
      %v1016 = vsel %vm1009, %v990, 0
      %v1017 = vsel %vm1009, %v992, 0
      %v1018 = vsel %vm1009, %v994, 0
      %v1019 = vsel %vm1009, %v996, 0
      %v1020 = vld [vmem:[%s3] sm:$0xf]
      %v1021 = vld [vmem:[%s3 + $0x4] sm:$0xf]
      %v1022 = vld [vmem:[%s3 + $0x8] sm:$0xf]
      %v1023 = vld [vmem:[%s3 + $0xc] sm:$0xf]
      %v1024 = vld [vmem:[%s3 + $0x10] sm:$0xf]
      %v1025 = vld [vmem:[%s3 + $0x14] sm:$0xf]
      %v1026 = vld [vmem:[%s3 + $0x18] sm:$0xf]
      %v1027 = vld [vmem:[%s3 + $0x1c] sm:$0xf]
      %v1028 = vld [vmem:[%s3 + $0x20] sm:$0xf]
      %v1029 = vld [vmem:[%s3 + $0x24] sm:$0xf]
      %v1030 = vld [vmem:[%s3 + $0x28] sm:$0xf]
      %v1031 = vld [vmem:[%s3 + $0x2c] sm:$0xf]
      %v1032 = vld [vmem:[%s3 + $0x30] sm:$0xf]
      %v1033 = vld [vmem:[%s3 + $0x34] sm:$0xf]
      %v1034 = vld [vmem:[%s3 + $0x38] sm:$0xf]
      %v1035 = vld [vmem:[%s3 + $0x3c] sm:$0xf]
      %v1036 = vld [vmem:[%s3 + $0x40] sm:$0xf]
      %v1037 = vld [vmem:[%s3 + $0x44] sm:$0xf]
      %v1038 = vld [vmem:[%s3 + $0x48] sm:$0xf]
      %v1039 = vld [vmem:[%s3 + $0x4c] sm:$0xf]
      %v1040 = vld [vmem:[%s3 + $0x50] sm:$0xf]
      %v1041 = vld [vmem:[%s3 + $0x54] sm:$0xf]
      %v1042 = vld [vmem:[%s3 + $0x58] sm:$0xf]
      %v1043 = vld [vmem:[%s3 + $0x5c] sm:$0xf]
      %v1044 = vld [vmem:[%s3 + $0x60] sm:$0xf]
      %v1045 = vld [vmem:[%s3 + $0x64] sm:$0xf]
      %v1046 = vld [vmem:[%s3 + $0x68] sm:$0xf]
      %v1047 = vld [vmem:[%s3 + $0x6c] sm:$0xf]
      %v1048 = vld [vmem:[%s3 + $0x70] sm:$0xf]
      %v1049 = vld [vmem:[%s3 + $0x74] sm:$0xf]
      %v1050 = vld [vmem:[%s3 + $0x78] sm:$0xf]
      %v1051 = vld [vmem:[%s3 + $0x7c] sm:$0xf]
      %v1052 = vld [vmem:[%s3 + $0x80] sm:$0xf]
      %v1053 = vld [vmem:[%s3 + $0x84] sm:$0xf]
      %v1054 = vld [vmem:[%s3 + $0x88] sm:$0xf]
      %v1055 = vld [vmem:[%s3 + $0x8c] sm:$0xf]
      %v1056 = vld [vmem:[%s3 + $0x90] sm:$0xf]
      %v1057 = vld [vmem:[%s3 + $0x94] sm:$0xf]
      %v1058 = vld [vmem:[%s3 + $0x98] sm:$0xf]
      %v1059 = vld [vmem:[%s3 + $0x9c] sm:$0xf]
      %v1060 = vld [vmem:[%s3 + $0xa0] sm:$0xf]
      %v1061 = vld [vmem:[%s3 + $0xa4] sm:$0xf]
      %v1062 = vld [vmem:[%s3 + $0xa8] sm:$0xf]
      %v1063 = vld [vmem:[%s3 + $0xac] sm:$0xf]
      %v1064 = vld [vmem:[%s3 + $0xb0] sm:$0xf]
      %v1065 = vld [vmem:[%s3 + $0xb4] sm:$0xf]
      %v1066 = vld [vmem:[%s3 + $0xb8] sm:$0xf]
      %v1067 = vld [vmem:[%s3 + $0xbc] sm:$0xf]
      %s1068 = scalar_lea.vmem %s3, 192
      %v1069 = vld [vmem:[%s1068] sm:$0xf]
      %v1070 = vld [vmem:[%s1068 + $0x4] sm:$0xf]
      %v1071 = vld [vmem:[%s1068 + $0x8] sm:$0xf]
      %v1072 = vld [vmem:[%s1068 + $0xc] sm:$0xf]
      %v1073 = vld [vmem:[%s1068 + $0x10] sm:$0xf]
      %v1074 = vld [vmem:[%s1068 + $0x14] sm:$0xf]
      %v1075 = vld [vmem:[%s1068 + $0x18] sm:$0xf]
      %v1076 = vld [vmem:[%s1068 + $0x1c] sm:$0xf]
      %v1077 = vld [vmem:[%s1068 + $0x20] sm:$0xf]
      %v1078 = vld [vmem:[%s1068 + $0x24] sm:$0xf]
      %v1079 = vld [vmem:[%s1068 + $0x28] sm:$0xf]
      %v1080 = vld [vmem:[%s1068 + $0x2c] sm:$0xf]
      %v1081 = vld [vmem:[%s1068 + $0x30] sm:$0xf]
      %v1082 = vld [vmem:[%s1068 + $0x34] sm:$0xf]
      %v1083 = vld [vmem:[%s1068 + $0x38] sm:$0xf]
      %v1084 = vld [vmem:[%s1068 + $0x3c] sm:$0xf]
      %v1085 = vld [vmem:[%s1068 + $0x40] sm:$0xf]
      %v1086 = vld [vmem:[%s1068 + $0x44] sm:$0xf]
      %v1087 = vld [vmem:[%s1068 + $0x48] sm:$0xf]
      %v1088 = vld [vmem:[%s1068 + $0x4c] sm:$0xf]
      %v1089 = vld [vmem:[%s1068 + $0x50] sm:$0xf]
      %v1090 = vld [vmem:[%s1068 + $0x54] sm:$0xf]
      %v1091 = vld [vmem:[%s1068 + $0x58] sm:$0xf]
      %v1092 = vld [vmem:[%s1068 + $0x5c] sm:$0xf]
      %v1093 = vld [vmem:[%s1068 + $0x60] sm:$0xf]
      %v1094 = vld [vmem:[%s1068 + $0x64] sm:$0xf]
      %v1095 = vld [vmem:[%s1068 + $0x68] sm:$0xf]
      %v1096 = vld [vmem:[%s1068 + $0x6c] sm:$0xf]
      %v1097 = vld [vmem:[%s1068 + $0x70] sm:$0xf]
      %v1098 = vld [vmem:[%s1068 + $0x74] sm:$0xf]
      %v1099 = vld [vmem:[%s1068 + $0x78] sm:$0xf]
      %v1100 = vld [vmem:[%s1068 + $0x7c] sm:$0xf]
      %v1101 = vld [vmem:[%s1068 + $0x80] sm:$0xf]
      %v1102 = vld [vmem:[%s1068 + $0x84] sm:$0xf]
      %v1103 = vld [vmem:[%s1068 + $0x88] sm:$0xf]
      %v1104 = vld [vmem:[%s1068 + $0x8c] sm:$0xf]
      %v1105 = vld [vmem:[%s1068 + $0x90] sm:$0xf]
      %v1106 = vld [vmem:[%s1068 + $0x94] sm:$0xf]
      %v1107 = vld [vmem:[%s1068 + $0x98] sm:$0xf]
      %v1108 = vld [vmem:[%s1068 + $0x9c] sm:$0xf]
      %v1109 = vld [vmem:[%s1068 + $0xa0] sm:$0xf]
      %v1110 = vld [vmem:[%s1068 + $0xa4] sm:$0xf]
      %v1111 = vld [vmem:[%s1068 + $0xa8] sm:$0xf]
      %v1112 = vld [vmem:[%s1068 + $0xac] sm:$0xf]
      %v1113 = vld [vmem:[%s1068 + $0xb0] sm:$0xf]
      %v1114 = vld [vmem:[%s1068 + $0xb4] sm:$0xf]
      %v1115 = vld [vmem:[%s1068 + $0xb8] sm:$0xf]
      %v1116 = vld [vmem:[%s1068 + $0xbc] sm:$0xf]
      %v1165 = vunpack.c.l.b16 %v1069
      %v1166 = vunpack.c.l.b16 %v1070
      %v1167 = vunpack.c.l.b16 %v1071
      %v1168 = vunpack.c.l.b16 %v1072
      %v1169 = vunpack.c.l.b16 %v1073
      %v1170 = vunpack.c.l.b16 %v1074
      %v1171 = vunpack.c.l.b16 %v1075
      %v1172 = vunpack.c.l.b16 %v1076
      %v1173 = vunpack.c.l.b16 %v1077
      %v1174 = vunpack.c.l.b16 %v1078
      %v1175 = vunpack.c.l.b16 %v1079
      %v1176 = vunpack.c.l.b16 %v1080
      %v1177 = vunpack.c.l.b16 %v1081
      %v1178 = vunpack.c.l.b16 %v1082
      %v1179 = vunpack.c.l.b16 %v1083
      %v1180 = vunpack.c.l.b16 %v1084
      %v1181 = vunpack.c.l.b16 %v1085
      %v1182 = vunpack.c.l.b16 %v1086
      %v1183 = vunpack.c.l.b16 %v1087
      %v1184 = vunpack.c.l.b16 %v1088
      %v1185 = vunpack.c.l.b16 %v1089
      %v1186 = vunpack.c.l.b16 %v1090
      %v1187 = vunpack.c.l.b16 %v1091
      %v1188 = vunpack.c.l.b16 %v1092
      %v1189 = vunpack.c.l.b16 %v1093
      %v1190 = vunpack.c.l.b16 %v1094
      %v1191 = vunpack.c.l.b16 %v1095
      %v1192 = vunpack.c.l.b16 %v1096
      %v1193 = vunpack.c.l.b16 %v1097
      %v1194 = vunpack.c.l.b16 %v1098
      %v1195 = vunpack.c.l.b16 %v1099
      %v1196 = vunpack.c.l.b16 %v1100
      %v1197 = vunpack.c.l.b16 %v1101
      %v1198 = vunpack.c.l.b16 %v1102
      %v1199 = vunpack.c.l.b16 %v1103
      %v1200 = vunpack.c.l.b16 %v1104
      %v1201 = vunpack.c.l.b16 %v1105
      %v1202 = vunpack.c.l.b16 %v1106
      %v1203 = vunpack.c.l.b16 %v1107
      %v1204 = vunpack.c.l.b16 %v1108
      %v1205 = vunpack.c.l.b16 %v1109
      %v1206 = vunpack.c.l.b16 %v1110
      %v1207 = vunpack.c.l.b16 %v1111
      %v1208 = vunpack.c.l.b16 %v1112
      %v1209 = vunpack.c.l.b16 %v1113
      %v1210 = vunpack.c.l.b16 %v1114
      %v1211 = vunpack.c.l.b16 %v1115
      %v1212 = vunpack.c.l.b16 %v1116
      %v1213 = vpack.c.b16 %v1166, %v1165
      %v1214 = vpack.c.b16 %v1168, %v1167
      %v1215 = vpack.c.b16 %v1170, %v1169
      %v1216 = vpack.c.b16 %v1172, %v1171
      %v1217 = vpack.c.b16 %v1174, %v1173
      %v1218 = vpack.c.b16 %v1176, %v1175
      %v1219 = vpack.c.b16 %v1178, %v1177
      %v1220 = vpack.c.b16 %v1180, %v1179
      %v1221 = vpack.c.b16 %v1182, %v1181
      %v1222 = vpack.c.b16 %v1184, %v1183
      %v1223 = vpack.c.b16 %v1186, %v1185
      %v1224 = vpack.c.b16 %v1188, %v1187
      %v1225 = vpack.c.b16 %v1190, %v1189
      %v1226 = vpack.c.b16 %v1192, %v1191
      %v1227 = vpack.c.b16 %v1194, %v1193
      %v1228 = vpack.c.b16 %v1196, %v1195
      %v1229 = vpack.c.b16 %v1198, %v1197
      %v1230 = vpack.c.b16 %v1200, %v1199
      %v1231 = vpack.c.b16 %v1202, %v1201
      %v1232 = vpack.c.b16 %v1204, %v1203
      %v1233 = vpack.c.b16 %v1206, %v1205
      %v1234 = vpack.c.b16 %v1208, %v1207
      %v1235 = vpack.c.b16 %v1210, %v1209
      %v1236 = vpack.c.b16 %v1212, %v1211
      %1261 = vmatprep.subr.bf16.mxu0 0
      %1262 = vmatpush1.bf16.msra.mxu0 %v1213
      %1263 = vmatprep.subr.bf16.mxu0 0
      %1264 = vmatpush1.bf16.msra.mxu0 %v1214
      %1265 = vmatprep.subr.bf16.mxu0 0
      %1266 = vmatpush1.bf16.msra.mxu0 %v1215
      %1267 = vmatprep.subr.bf16.mxu0 0
      %1268 = vmatpush1.bf16.msra.mxu0 %v1216
      %1269 = vmatprep.subr.bf16.mxu0 0
      %1270 = vmatpush1.bf16.msra.mxu0 %v1217
      %1271 = vmatprep.subr.bf16.mxu0 0
      %1272 = vmatpush1.bf16.msra.mxu0 %v1218
      %1273 = vmatprep.subr.bf16.mxu0 0
      %1274 = vmatpush1.bf16.msra.mxu0 %v1219
      %1275 = vmatprep.subr.bf16.mxu0 0
      %1276 = vmatpush1.bf16.msra.mxu0 %v1220
      %1277 = vmatprep.subr.bf16.mxu0 0
      %1278 = vmatpush1.bf16.msra.mxu0 %v1221
      %1279 = vmatprep.subr.bf16.mxu0 0
      %1280 = vmatpush1.bf16.msra.mxu0 %v1222
      %1281 = vmatprep.subr.bf16.mxu0 0
      %1282 = vmatpush1.bf16.msra.mxu0 %v1223
      %1283 = vmatprep.subr.bf16.mxu0 0
      %1284 = vmatpush1.bf16.msra.mxu0 %v1224
      %1285 = vmatprep.subr.bf16.mxu0 0
      %1286 = vmatpush1.bf16.msra.mxu0 %v1225
      %1287 = vmatprep.subr.bf16.mxu0 0
      %1288 = vmatpush1.bf16.msra.mxu0 %v1226
      %1289 = vmatprep.subr.bf16.mxu0 0
      %1290 = vmatpush1.bf16.msra.mxu0 %v1227
      %1291 = vmatprep.subr.bf16.mxu0 0
      %1292 = vmatpush1.bf16.msra.mxu0 %v1228
      %1293 = vmatprep.mubr.bf16.mxu0 %v875
      %1294 = vmatmul.mubr.bf16.gmra.mrb[0].mxu0 %v968
      %v1295 = vpop.f32.mrb[0].mxu0
      %v1296 = vadd.f32 0.0, %v1295
      %v1297 = vpop.f32.mrb[0].mxu0
      %v1298 = vpop.f32.mrb[0].mxu0
      %v1299 = vadd.f32 0.0, %v1298
      %v1300 = vpop.f32.mrb[0].mxu0
      %1301 = vmatprep.mubr.bf16.mxu0 %v876
      %1302 = vmatmul.mubr.bf16.gmra.mrb[0].mxu0 %v969
      %v1303 = vpop.f32.mrb[0].mxu0
      %v1304 = vadd.f32 0.0, %v1303
      %v1305 = vpop.f32.mrb[0].mxu0
      %v1306 = vpop.f32.mrb[0].mxu0
      %v1307 = vadd.f32 0.0, %v1306
      %v1308 = vpop.f32.mrb[0].mxu0
      %1309 = vmatprep.mubr.bf16.mxu0 %v877
      %1310 = vmatmul.mubr.bf16.gmra.mrb[0].mxu0 %v970
      %v1311 = vpop.f32.mrb[0].mxu0
      %v1312 = vadd.f32 0.0, %v1311
      %v1313 = vpop.f32.mrb[0].mxu0
      %v1314 = vpop.f32.mrb[0].mxu0
      %v1315 = vadd.f32 0.0, %v1314
      %v1316 = vpop.f32.mrb[0].mxu0
      %1317 = vmatprep.mubr.bf16.mxu0 %v878
      %1318 = vmatmul.mubr.bf16.gmra.mrb[0].mxu0 %v971
      %v1319 = vpop.f32.mrb[0].mxu0
      %v1320 = vadd.f32 0.0, %v1319
      %v1321 = vpop.f32.mrb[0].mxu0
      %v1322 = vpop.f32.mrb[0].mxu0
      %v1323 = vadd.f32 0.0, %v1322
      %v1324 = vpop.f32.mrb[0].mxu0
      %1325 = vmatprep.mubr.bf16.mxu0 %v879
      %1326 = vmatmul.mubr.bf16.gmra.mrb[0].mxu0 %v972
      %v1327 = vpop.f32.mrb[0].mxu0
      %v1328 = vadd.f32 0.0, %v1327
      %v1329 = vpop.f32.mrb[0].mxu0
      %v1330 = vpop.f32.mrb[0].mxu0
      %v1331 = vadd.f32 0.0, %v1330
      %v1332 = vpop.f32.mrb[0].mxu0
      %1333 = vmatprep.mubr.bf16.mxu0 %v880
      %1334 = vmatmul.mubr.bf16.gmra.mrb[0].mxu0 %v973
      %v1335 = vpop.f32.mrb[0].mxu0
      %v1336 = vadd.f32 0.0, %v1335
      %v1337 = vpop.f32.mrb[0].mxu0
      %v1338 = vpop.f32.mrb[0].mxu0
      %v1339 = vadd.f32 0.0, %v1338
      %v1340 = vpop.f32.mrb[0].mxu0
      %1341 = vmatprep.mubr.bf16.mxu0 %v881
      %1342 = vmatmul.mubr.bf16.gmra.mrb[0].mxu0 %v974
      %v1343 = vpop.f32.mrb[0].mxu0
      %v1344 = vadd.f32 0.0, %v1343
      %v1345 = vpop.f32.mrb[0].mxu0
      %v1346 = vpop.f32.mrb[0].mxu0
      %v1347 = vadd.f32 0.0, %v1346
      %v1348 = vpop.f32.mrb[0].mxu0
      %1349 = vmatprep.mubr.bf16.mxu0 %v882
      %1350 = vmatmul.mubr.bf16.gmra.mrb[0].mxu0 %v975
      %v1351 = vpop.f32.mrb[0].mxu0
      %v1352 = vadd.f32 0.0, %v1351
      %v1353 = vpop.f32.mrb[0].mxu0
      %v1354 = vpop.f32.mrb[0].mxu0
      %v1355 = vadd.f32 0.0, %v1354
      %v1356 = vpop.f32.mrb[0].mxu0
      %1357 = vdwg.mxu0
      %1358 = vmatprep.subr.bf16.mxu0 0
      %1359 = vmatpush1.bf16.msra.mxu0 %v1229
      %1360 = vmatprep.subr.bf16.mxu0 0
      %1361 = vmatpush1.bf16.msra.mxu0 %v1230
      %1362 = vmatprep.subr.bf16.mxu0 0
      %1363 = vmatpush1.bf16.msra.mxu0 %v1231
      %1364 = vmatprep.subr.bf16.mxu0 0
      %1365 = vmatpush1.bf16.msra.mxu0 %v1232
      %1366 = vmatprep.subr.bf16.mxu0 0
      %1367 = vmatpush1.bf16.msra.mxu0 %v1233
      %1368 = vmatprep.subr.bf16.mxu0 0
      %1369 = vmatpush1.bf16.msra.mxu0 %v1234
      %1370 = vmatprep.subr.bf16.mxu0 0
      %1371 = vmatpush1.bf16.msra.mxu0 %v1235
      %1372 = vmatprep.subr.bf16.mxu0 0
      %1373 = vmatpush1.bf16.msra.mxu0 %v1236
      %1374 = vmatprep.subr.bf16.mxu0 0
      %1375 = vmatpush1.bf16.msra.mxu0 0
      %1376 = vmatprep.subr.bf16.mxu0 0
      %1377 = vmatpush1.bf16.msra.mxu0 0
      %1378 = vmatprep.subr.bf16.mxu0 0
      %1379 = vmatpush1.bf16.msra.mxu0 0
      %1380 = vmatprep.subr.bf16.mxu0 0
      %1381 = vmatpush1.bf16.msra.mxu0 0
      %1382 = vmatprep.subr.bf16.mxu0 0
      %1383 = vmatpush1.bf16.msra.mxu0 0
      %1384 = vmatprep.subr.bf16.mxu0 0
      %1385 = vmatpush1.bf16.msra.mxu0 0
      %1386 = vmatprep.subr.bf16.mxu0 0
      %1387 = vmatpush1.bf16.msra.mxu0 0
      %1388 = vmatprep.subr.bf16.mxu0 0
      %1389 = vmatpush1.bf16.msra.mxu0 0
      %1390 = vmatprep.mubr.bf16.mxu0 0
      %1391 = vmatmul.mubr.bf16.gmra.mrb[0].mxu0 %v1011
      %v1392 = vpop.f32.mrb[0].mxu0
      %v1393 = vadd.f32 %v1296, %v1392
      %v1394 = vpop.f32.mrb[0].mxu0
      %v1395 = vpop.f32.mrb[0].mxu0
      %v1396 = vadd.f32 %v1299, %v1395
      %v1397 = vpop.f32.mrb[0].mxu0
      %1398 = vmatprep.mubr.bf16.mxu0 0
      %1399 = vmatmul.mubr.bf16.gmra.mrb[0].mxu0 %v1012
      %v1400 = vpop.f32.mrb[0].mxu0
      %v1401 = vadd.f32 %v1304, %v1400
      %v1402 = vpop.f32.mrb[0].mxu0
      %v1403 = vpop.f32.mrb[0].mxu0
      %v1404 = vadd.f32 %v1307, %v1403
      %v1405 = vpop.f32.mrb[0].mxu0
      %1406 = vmatprep.mubr.bf16.mxu0 0
      %1407 = vmatmul.mubr.bf16.gmra.mrb[0].mxu0 %v1013
      %v1408 = vpop.f32.mrb[0].mxu0
      %v1409 = vadd.f32 %v1312, %v1408
      %v1410 = vpop.f32.mrb[0].mxu0
      %v1411 = vpop.f32.mrb[0].mxu0
      %v1412 = vadd.f32 %v1315, %v1411
      %v1413 = vpop.f32.mrb[0].mxu0
      %1414 = vmatprep.mubr.bf16.mxu0 0
      %1415 = vmatmul.mubr.bf16.gmra.mrb[0].mxu0 %v1014
      %v1416 = vpop.f32.mrb[0].mxu0
      %v1417 = vadd.f32 %v1320, %v1416
      %v1418 = vpop.f32.mrb[0].mxu0
      %v1419 = vpop.f32.mrb[0].mxu0
      %v1420 = vadd.f32 %v1323, %v1419
      %v1421 = vpop.f32.mrb[0].mxu0
      %1422 = vmatprep.mubr.bf16.mxu0 0
      %1423 = vmatmul.mubr.bf16.gmra.mrb[0].mxu0 %v1015
      %v1424 = vpop.f32.mrb[0].mxu0
      %v1425 = vadd.f32 %v1328, %v1424
      %v1426 = vpop.f32.mrb[0].mxu0
      %v1427 = vpop.f32.mrb[0].mxu0
      %v1428 = vadd.f32 %v1331, %v1427
      %v1429 = vpop.f32.mrb[0].mxu0
      %1430 = vmatprep.mubr.bf16.mxu0 0
      %1431 = vmatmul.mubr.bf16.gmra.mrb[0].mxu0 %v1016
      %v1432 = vpop.f32.mrb[0].mxu0
      %v1433 = vadd.f32 %v1336, %v1432
      %v1434 = vpop.f32.mrb[0].mxu0
      %v1435 = vpop.f32.mrb[0].mxu0
      %v1436 = vadd.f32 %v1339, %v1435
      %v1437 = vpop.f32.mrb[0].mxu0
      %1438 = vmatprep.mubr.bf16.mxu0 0
      %1439 = vmatmul.mubr.bf16.gmra.mrb[0].mxu0 %v1017
      %v1440 = vpop.f32.mrb[0].mxu0
      %v1441 = vadd.f32 %v1344, %v1440
      %v1442 = vpop.f32.mrb[0].mxu0
      %v1443 = vpop.f32.mrb[0].mxu0
      %v1444 = vadd.f32 %v1347, %v1443
      %v1445 = vpop.f32.mrb[0].mxu0
      %1446 = vmatprep.mubr.bf16.mxu0 0
      %1447 = vmatmul.mubr.bf16.gmra.mrb[0].mxu0 %v1018
      %v1448 = vpop.f32.mrb[0].mxu0
      %v1449 = vadd.f32 %v1352, %v1448
      %v1450 = vpop.f32.mrb[0].mxu0
      %v1451 = vpop.f32.mrb[0].mxu0
      %v1452 = vadd.f32 %v1355, %v1451
      %v1453 = vpop.f32.mrb[0].mxu0
      %1454 = vdwg.mxu0
      %v1503 = vunpack.c.l.b16 %v1020
      %v1504 = vunpack.c.l.b16 %v1021
      %v1505 = vunpack.c.l.b16 %v1022
      %v1506 = vunpack.c.l.b16 %v1023
      %v1507 = vunpack.c.l.b16 %v1024
      %v1508 = vunpack.c.l.b16 %v1025
      %v1509 = vunpack.c.l.b16 %v1026
      %v1510 = vunpack.c.l.b16 %v1027
      %v1511 = vunpack.c.l.b16 %v1028
      %v1512 = vunpack.c.l.b16 %v1029
      %v1513 = vunpack.c.l.b16 %v1030
      %v1514 = vunpack.c.l.b16 %v1031
      %v1515 = vunpack.c.l.b16 %v1032
      %v1516 = vunpack.c.l.b16 %v1033
      %v1517 = vunpack.c.l.b16 %v1034
      %v1518 = vunpack.c.l.b16 %v1035
      %v1519 = vunpack.c.l.b16 %v1036
      %v1520 = vunpack.c.l.b16 %v1037
      %v1521 = vunpack.c.l.b16 %v1038
      %v1522 = vunpack.c.l.b16 %v1039
      %v1523 = vunpack.c.l.b16 %v1040
      %v1524 = vunpack.c.l.b16 %v1041
      %v1525 = vunpack.c.l.b16 %v1042
      %v1526 = vunpack.c.l.b16 %v1043
      %v1527 = vunpack.c.l.b16 %v1044
      %v1528 = vunpack.c.l.b16 %v1045
      %v1529 = vunpack.c.l.b16 %v1046
      %v1530 = vunpack.c.l.b16 %v1047
      %v1531 = vunpack.c.l.b16 %v1048
      %v1532 = vunpack.c.l.b16 %v1049
      %v1533 = vunpack.c.l.b16 %v1050
      %v1534 = vunpack.c.l.b16 %v1051
      %v1535 = vunpack.c.l.b16 %v1052
      %v1536 = vunpack.c.l.b16 %v1053
      %v1537 = vunpack.c.l.b16 %v1054
      %v1538 = vunpack.c.l.b16 %v1055
      %v1539 = vunpack.c.l.b16 %v1056
      %v1540 = vunpack.c.l.b16 %v1057
      %v1541 = vunpack.c.l.b16 %v1058
      %v1542 = vunpack.c.l.b16 %v1059
      %v1543 = vunpack.c.l.b16 %v1060
      %v1544 = vunpack.c.l.b16 %v1061
      %v1545 = vunpack.c.l.b16 %v1062
      %v1546 = vunpack.c.l.b16 %v1063
      %v1547 = vunpack.c.l.b16 %v1064
      %v1548 = vunpack.c.l.b16 %v1065
      %v1549 = vunpack.c.l.b16 %v1066
      %v1550 = vunpack.c.l.b16 %v1067
      %v1551 = vpack.c.b16 %v1504, %v1503
      %v1552 = vpack.c.b16 %v1506, %v1505
      %v1553 = vpack.c.b16 %v1508, %v1507
      %v1554 = vpack.c.b16 %v1510, %v1509
      %v1555 = vpack.c.b16 %v1512, %v1511
      %v1556 = vpack.c.b16 %v1514, %v1513
      %v1557 = vpack.c.b16 %v1516, %v1515
      %v1558 = vpack.c.b16 %v1518, %v1517
      %v1559 = vpack.c.b16 %v1520, %v1519
      %v1560 = vpack.c.b16 %v1522, %v1521
      %v1561 = vpack.c.b16 %v1524, %v1523
      %v1562 = vpack.c.b16 %v1526, %v1525
      %v1563 = vpack.c.b16 %v1528, %v1527
      %v1564 = vpack.c.b16 %v1530, %v1529
      %v1565 = vpack.c.b16 %v1532, %v1531
      %v1566 = vpack.c.b16 %v1534, %v1533
      %v1567 = vpack.c.b16 %v1536, %v1535
      %v1568 = vpack.c.b16 %v1538, %v1537
      %v1569 = vpack.c.b16 %v1540, %v1539
      %v1570 = vpack.c.b16 %v1542, %v1541
      %v1571 = vpack.c.b16 %v1544, %v1543
      %v1572 = vpack.c.b16 %v1546, %v1545
      %v1573 = vpack.c.b16 %v1548, %v1547
      %v1574 = vpack.c.b16 %v1550, %v1549
      %1599 = vmatprep.subr.bf16.mxu0 0
      %1600 = vmatpush1.bf16.msra.mxu0 %v1551
      %1601 = vmatprep.subr.bf16.mxu0 0
      %1602 = vmatpush1.bf16.msra.mxu0 %v1552
      %1603 = vmatprep.subr.bf16.mxu0 0
      %1604 = vmatpush1.bf16.msra.mxu0 %v1553
      %1605 = vmatprep.subr.bf16.mxu0 0
      %1606 = vmatpush1.bf16.msra.mxu0 %v1554
      %1607 = vmatprep.subr.bf16.mxu0 0
      %1608 = vmatpush1.bf16.msra.mxu0 %v1555
      %1609 = vmatprep.subr.bf16.mxu0 0
      %1610 = vmatpush1.bf16.msra.mxu0 %v1556
      %1611 = vmatprep.subr.bf16.mxu0 0
      %1612 = vmatpush1.bf16.msra.mxu0 %v1557
      %1613 = vmatprep.subr.bf16.mxu0 0
      %1614 = vmatpush1.bf16.msra.mxu0 %v1558
      %1615 = vmatprep.subr.bf16.mxu0 0
      %1616 = vmatpush1.bf16.msra.mxu0 %v1559
      %1617 = vmatprep.subr.bf16.mxu0 0
      %1618 = vmatpush1.bf16.msra.mxu0 %v1560
      %1619 = vmatprep.subr.bf16.mxu0 0
      %1620 = vmatpush1.bf16.msra.mxu0 %v1561
      %1621 = vmatprep.subr.bf16.mxu0 0
      %1622 = vmatpush1.bf16.msra.mxu0 %v1562
      %1623 = vmatprep.subr.bf16.mxu0 0
      %1624 = vmatpush1.bf16.msra.mxu0 %v1563
      %1625 = vmatprep.subr.bf16.mxu0 0
      %1626 = vmatpush1.bf16.msra.mxu0 %v1564
      %1627 = vmatprep.subr.bf16.mxu0 0
      %1628 = vmatpush1.bf16.msra.mxu0 %v1565
      %1629 = vmatprep.subr.bf16.mxu0 0
      %1630 = vmatpush1.bf16.msra.mxu0 %v1566
      %1631 = vmatprep.mubr.bf16.mxu0 %v874
      %1632 = vmatmul.mubr.bf16.gmra.mrb[0].mxu0 %v967
      %v1633 = vpop.f32.mrb[0].mxu0
      %v1634 = vadd.f32 %v1393, %v1633
      %v1635 = vpop.f32.mrb[0].mxu0
      %v1636 = vpop.f32.mrb[0].mxu0
      %v1637 = vadd.f32 %v1396, %v1636
      %v1638 = vpop.f32.mrb[0].mxu0
      %1639 = vmatprep.mubr.bf16.mxu0 %v875
      %1640 = vmatmul.mubr.bf16.gmra.mrb[0].mxu0 %v968
      %v1641 = vpop.f32.mrb[0].mxu0
      %v1642 = vadd.f32 %v1401, %v1641
      %v1643 = vpop.f32.mrb[0].mxu0
      %v1644 = vpop.f32.mrb[0].mxu0
      %v1645 = vadd.f32 %v1404, %v1644
      %v1646 = vpop.f32.mrb[0].mxu0
      %1647 = vmatprep.mubr.bf16.mxu0 %v876
      %1648 = vmatmul.mubr.bf16.gmra.mrb[0].mxu0 %v969
      %v1649 = vpop.f32.mrb[0].mxu0
      %v1650 = vadd.f32 %v1409, %v1649
      %v1651 = vpop.f32.mrb[0].mxu0
      %v1652 = vpop.f32.mrb[0].mxu0
      %v1653 = vadd.f32 %v1412, %v1652
      %v1654 = vpop.f32.mrb[0].mxu0
      %1655 = vmatprep.mubr.bf16.mxu0 %v877
      %1656 = vmatmul.mubr.bf16.gmra.mrb[0].mxu0 %v970
      %v1657 = vpop.f32.mrb[0].mxu0
      %v1658 = vadd.f32 %v1417, %v1657
      %v1659 = vpop.f32.mrb[0].mxu0
      %v1660 = vpop.f32.mrb[0].mxu0
      %v1661 = vadd.f32 %v1420, %v1660
      %v1662 = vpop.f32.mrb[0].mxu0
      %1663 = vmatprep.mubr.bf16.mxu0 %v878
      %1664 = vmatmul.mubr.bf16.gmra.mrb[0].mxu0 %v971
      %v1665 = vpop.f32.mrb[0].mxu0
      %v1666 = vadd.f32 %v1425, %v1665
      %v1667 = vpop.f32.mrb[0].mxu0
      %v1668 = vpop.f32.mrb[0].mxu0
      %v1669 = vadd.f32 %v1428, %v1668
      %v1670 = vpop.f32.mrb[0].mxu0
      %1671 = vmatprep.mubr.bf16.mxu0 %v879
      %1672 = vmatmul.mubr.bf16.gmra.mrb[0].mxu0 %v972
      %v1673 = vpop.f32.mrb[0].mxu0
      %v1674 = vadd.f32 %v1433, %v1673
      %v1675 = vpop.f32.mrb[0].mxu0
      %v1676 = vpop.f32.mrb[0].mxu0
      %v1677 = vadd.f32 %v1436, %v1676
      %v1678 = vpop.f32.mrb[0].mxu0
      %1679 = vmatprep.mubr.bf16.mxu0 %v880
      %1680 = vmatmul.mubr.bf16.gmra.mrb[0].mxu0 %v973
      %v1681 = vpop.f32.mrb[0].mxu0
      %v1682 = vadd.f32 %v1441, %v1681
      %v1683 = vpop.f32.mrb[0].mxu0
      %v1684 = vpop.f32.mrb[0].mxu0
      %v1685 = vadd.f32 %v1444, %v1684
      %v1686 = vpop.f32.mrb[0].mxu0
      %1687 = vmatprep.mubr.bf16.mxu0 %v881
      %1688 = vmatmul.mubr.bf16.gmra.mrb[0].mxu0 %v974
      %v1689 = vpop.f32.mrb[0].mxu0
      %v1690 = vadd.f32 %v1449, %v1689
      %v1691 = vpop.f32.mrb[0].mxu0
      %v1692 = vpop.f32.mrb[0].mxu0
      %v1693 = vadd.f32 %v1452, %v1692
      %v1694 = vpop.f32.mrb[0].mxu0
      %1695 = vdwg.mxu0
      %1696 = vmatprep.subr.bf16.mxu0 0
      %1697 = vmatpush1.bf16.msra.mxu0 %v1567
      %1698 = vmatprep.subr.bf16.mxu0 0
      %1699 = vmatpush1.bf16.msra.mxu0 %v1568
      %1700 = vmatprep.subr.bf16.mxu0 0
      %1701 = vmatpush1.bf16.msra.mxu0 %v1569
      %1702 = vmatprep.subr.bf16.mxu0 0
      %1703 = vmatpush1.bf16.msra.mxu0 %v1570
      %1704 = vmatprep.subr.bf16.mxu0 0
      %1705 = vmatpush1.bf16.msra.mxu0 %v1571
      %1706 = vmatprep.subr.bf16.mxu0 0
      %1707 = vmatpush1.bf16.msra.mxu0 %v1572
      %1708 = vmatprep.subr.bf16.mxu0 0
      %1709 = vmatpush1.bf16.msra.mxu0 %v1573
      %1710 = vmatprep.subr.bf16.mxu0 0
      %1711 = vmatpush1.bf16.msra.mxu0 %v1574
      %1712 = vmatprep.subr.bf16.mxu0 0
      %1713 = vmatpush1.bf16.msra.mxu0 0
      %1714 = vmatprep.subr.bf16.mxu0 0
      %1715 = vmatpush1.bf16.msra.mxu0 0
      %1716 = vmatprep.subr.bf16.mxu0 0
      %1717 = vmatpush1.bf16.msra.mxu0 0
      %1718 = vmatprep.subr.bf16.mxu0 0
      %1719 = vmatpush1.bf16.msra.mxu0 0
      %1720 = vmatprep.subr.bf16.mxu0 0
      %1721 = vmatpush1.bf16.msra.mxu0 0
      %1722 = vmatprep.subr.bf16.mxu0 0
      %1723 = vmatpush1.bf16.msra.mxu0 0
      %1724 = vmatprep.subr.bf16.mxu0 0
      %1725 = vmatpush1.bf16.msra.mxu0 0
      %1726 = vmatprep.subr.bf16.mxu0 0
      %1727 = vmatpush1.bf16.msra.mxu0 0
      %1728 = vmatprep.mubr.bf16.mxu0 0
      %1729 = vmatmul.mubr.bf16.gmra.mrb[0].mxu0 %v1010
      %v1730 = vpop.f32.mrb[0].mxu0
      %v1731 = vadd.f32 %v1634, %v1730
      %v1732 = vpop.f32.mrb[0].mxu0
      %v1733 = vpop.f32.mrb[0].mxu0
      %v1734 = vadd.f32 %v1637, %v1733
      %v1735 = vpop.f32.mrb[0].mxu0
      %1736 = vmatprep.mubr.bf16.mxu0 0
      %1737 = vmatmul.mubr.bf16.gmra.mrb[0].mxu0 %v1011
      %v1738 = vpop.f32.mrb[0].mxu0
      %v1739 = vadd.f32 %v1642, %v1738
      %v1740 = vpop.f32.mrb[0].mxu0
      %v1741 = vpop.f32.mrb[0].mxu0
      %v1742 = vadd.f32 %v1645, %v1741
      %v1743 = vpop.f32.mrb[0].mxu0
      %1744 = vmatprep.mubr.bf16.mxu0 0
      %1745 = vmatmul.mubr.bf16.gmra.mrb[0].mxu0 %v1012
      %v1746 = vpop.f32.mrb[0].mxu0
      %v1747 = vadd.f32 %v1650, %v1746
      %v1748 = vpop.f32.mrb[0].mxu0
      %v1749 = vpop.f32.mrb[0].mxu0
      %v1750 = vadd.f32 %v1653, %v1749
      %v1751 = vpop.f32.mrb[0].mxu0
      %1752 = vmatprep.mubr.bf16.mxu0 0
      %1753 = vmatmul.mubr.bf16.gmra.mrb[0].mxu0 %v1013
      %v1754 = vpop.f32.mrb[0].mxu0
      %v1755 = vadd.f32 %v1658, %v1754
      %v1756 = vpop.f32.mrb[0].mxu0
      %v1757 = vpop.f32.mrb[0].mxu0
      %v1758 = vadd.f32 %v1661, %v1757
      %v1759 = vpop.f32.mrb[0].mxu0
      %1760 = vmatprep.mubr.bf16.mxu0 0
      %1761 = vmatmul.mubr.bf16.gmra.mrb[0].mxu0 %v1014
      %v1762 = vpop.f32.mrb[0].mxu0
      %v1763 = vadd.f32 %v1666, %v1762
      %v1764 = vpop.f32.mrb[0].mxu0
      %v1765 = vpop.f32.mrb[0].mxu0
      %v1766 = vadd.f32 %v1669, %v1765
      %v1767 = vpop.f32.mrb[0].mxu0
      %1768 = vmatprep.mubr.bf16.mxu0 0
      %1769 = vmatmul.mubr.bf16.gmra.mrb[0].mxu0 %v1015
      %v1770 = vpop.f32.mrb[0].mxu0
      %v1771 = vadd.f32 %v1674, %v1770
      %v1772 = vpop.f32.mrb[0].mxu0
      %v1773 = vpop.f32.mrb[0].mxu0
      %v1774 = vadd.f32 %v1677, %v1773
      %v1775 = vpop.f32.mrb[0].mxu0
      %1776 = vmatprep.mubr.bf16.mxu0 0
      %1777 = vmatmul.mubr.bf16.gmra.mrb[0].mxu0 %v1016
      %v1778 = vpop.f32.mrb[0].mxu0
      %v1779 = vadd.f32 %v1682, %v1778
      %v1780 = vpop.f32.mrb[0].mxu0
      %v1781 = vpop.f32.mrb[0].mxu0
      %v1782 = vadd.f32 %v1685, %v1781
      %v1783 = vpop.f32.mrb[0].mxu0
      %1784 = vmatprep.mubr.bf16.mxu0 0
      %1785 = vmatmul.mubr.bf16.gmra.mrb[0].mxu0 %v1017
      %v1786 = vpop.f32.mrb[0].mxu0
      %v1787 = vadd.f32 %v1690, %v1786
      %v1788 = vpop.f32.mrb[0].mxu0
      %v1789 = vpop.f32.mrb[0].mxu0
      %v1790 = vadd.f32 %v1693, %v1789
      %v1791 = vpop.f32.mrb[0].mxu0
      %1792 = vdwg.mxu0
      %s1793 = scalar_lea.vmem %s3, 384
      %v1794 = vld [vmem:[%s1793] sm:$0xf]
      %v1795 = vld [vmem:[%s1793 + $0x4] sm:$0xf]
      %v1796 = vld [vmem:[%s1793 + $0x8] sm:$0xf]
      %v1797 = vld [vmem:[%s1793 + $0xc] sm:$0xf]
      %v1798 = vld [vmem:[%s1793 + $0x10] sm:$0xf]
      %v1799 = vld [vmem:[%s1793 + $0x14] sm:$0xf]
      %v1800 = vld [vmem:[%s1793 + $0x18] sm:$0xf]
      %v1801 = vld [vmem:[%s1793 + $0x1c] sm:$0xf]
      %v1802 = vld [vmem:[%s1793 + $0x20] sm:$0xf]
      %v1803 = vld [vmem:[%s1793 + $0x24] sm:$0xf]
      %v1804 = vld [vmem:[%s1793 + $0x28] sm:$0xf]
      %v1805 = vld [vmem:[%s1793 + $0x2c] sm:$0xf]
      %v1806 = vld [vmem:[%s1793 + $0x30] sm:$0xf]
      %v1807 = vld [vmem:[%s1793 + $0x34] sm:$0xf]
      %v1808 = vld [vmem:[%s1793 + $0x38] sm:$0xf]
      %v1809 = vld [vmem:[%s1793 + $0x3c] sm:$0xf]
      %v1810 = vld [vmem:[%s1793 + $0x40] sm:$0xf]
      %v1811 = vld [vmem:[%s1793 + $0x44] sm:$0xf]
      %v1812 = vld [vmem:[%s1793 + $0x48] sm:$0xf]
      %v1813 = vld [vmem:[%s1793 + $0x4c] sm:$0xf]
      %v1814 = vld [vmem:[%s1793 + $0x50] sm:$0xf]
      %v1815 = vld [vmem:[%s1793 + $0x54] sm:$0xf]
      %v1816 = vld [vmem:[%s1793 + $0x58] sm:$0xf]
      %v1817 = vld [vmem:[%s1793 + $0x5c] sm:$0xf]
      %v1818 = vld [vmem:[%s1793 + $0x60] sm:$0xf]
      %v1819 = vld [vmem:[%s1793 + $0x64] sm:$0xf]
      %v1820 = vld [vmem:[%s1793 + $0x68] sm:$0xf]
      %v1821 = vld [vmem:[%s1793 + $0x6c] sm:$0xf]
      %v1822 = vld [vmem:[%s1793 + $0x70] sm:$0xf]
      %v1823 = vld [vmem:[%s1793 + $0x74] sm:$0xf]
      %v1824 = vld [vmem:[%s1793 + $0x78] sm:$0xf]
      %v1825 = vld [vmem:[%s1793 + $0x7c] sm:$0xf]
      %v1826 = vld [vmem:[%s1793 + $0x80] sm:$0xf]
      %v1827 = vld [vmem:[%s1793 + $0x84] sm:$0xf]
      %v1828 = vld [vmem:[%s1793 + $0x88] sm:$0xf]
      %v1829 = vld [vmem:[%s1793 + $0x8c] sm:$0xf]
      %v1830 = vld [vmem:[%s1793 + $0x90] sm:$0xf]
      %v1831 = vld [vmem:[%s1793 + $0x94] sm:$0xf]
      %v1832 = vld [vmem:[%s1793 + $0x98] sm:$0xf]
      %v1833 = vld [vmem:[%s1793 + $0x9c] sm:$0xf]
      %v1834 = vld [vmem:[%s1793 + $0xa0] sm:$0xf]
      %v1835 = vld [vmem:[%s1793 + $0xa4] sm:$0xf]
      %v1836 = vld [vmem:[%s1793 + $0xa8] sm:$0xf]
      %v1837 = vld [vmem:[%s1793 + $0xac] sm:$0xf]
      %v1838 = vld [vmem:[%s1793 + $0xb0] sm:$0xf]
      %v1839 = vld [vmem:[%s1793 + $0xb4] sm:$0xf]
      %v1840 = vld [vmem:[%s1793 + $0xb8] sm:$0xf]
      %v1841 = vld [vmem:[%s1793 + $0xbc] sm:$0xf]
      %v1890 = vunpack.c.l.b16 %v1794
      %v1891 = vunpack.c.l.b16 %v1795
      %v1892 = vunpack.c.l.b16 %v1796
      %v1893 = vunpack.c.l.b16 %v1797
      %v1894 = vunpack.c.l.b16 %v1798
      %v1895 = vunpack.c.l.b16 %v1799
      %v1896 = vunpack.c.l.b16 %v1800
      %v1897 = vunpack.c.l.b16 %v1801
      %v1898 = vunpack.c.l.b16 %v1802
      %v1899 = vunpack.c.l.b16 %v1803
      %v1900 = vunpack.c.l.b16 %v1804
      %v1901 = vunpack.c.l.b16 %v1805
      %v1902 = vunpack.c.l.b16 %v1806
      %v1903 = vunpack.c.l.b16 %v1807
      %v1904 = vunpack.c.l.b16 %v1808
      %v1905 = vunpack.c.l.b16 %v1809
      %v1906 = vunpack.c.l.b16 %v1810
      %v1907 = vunpack.c.l.b16 %v1811
      %v1908 = vunpack.c.l.b16 %v1812
      %v1909 = vunpack.c.l.b16 %v1813
      %v1910 = vunpack.c.l.b16 %v1814
      %v1911 = vunpack.c.l.b16 %v1815
      %v1912 = vunpack.c.l.b16 %v1816
      %v1913 = vunpack.c.l.b16 %v1817
      %v1914 = vunpack.c.l.b16 %v1818
      %v1915 = vunpack.c.l.b16 %v1819
      %v1916 = vunpack.c.l.b16 %v1820
      %v1917 = vunpack.c.l.b16 %v1821
      %v1918 = vunpack.c.l.b16 %v1822
      %v1919 = vunpack.c.l.b16 %v1823
      %v1920 = vunpack.c.l.b16 %v1824
      %v1921 = vunpack.c.l.b16 %v1825
      %v1922 = vunpack.c.l.b16 %v1826
      %v1923 = vunpack.c.l.b16 %v1827
      %v1924 = vunpack.c.l.b16 %v1828
      %v1925 = vunpack.c.l.b16 %v1829
      %v1926 = vunpack.c.l.b16 %v1830
      %v1927 = vunpack.c.l.b16 %v1831
      %v1928 = vunpack.c.l.b16 %v1832
      %v1929 = vunpack.c.l.b16 %v1833
      %v1930 = vunpack.c.l.b16 %v1834
      %v1931 = vunpack.c.l.b16 %v1835
      %v1932 = vunpack.c.l.b16 %v1836
      %v1933 = vunpack.c.l.b16 %v1837
      %v1934 = vunpack.c.l.b16 %v1838
      %v1935 = vunpack.c.l.b16 %v1839
      %v1936 = vunpack.c.l.b16 %v1840
      %v1937 = vunpack.c.l.b16 %v1841
      %v1938 = vpack.c.b16 %v1891, %v1890
      %v1939 = vpack.c.b16 %v1893, %v1892
      %v1940 = vpack.c.b16 %v1895, %v1894
      %v1941 = vpack.c.b16 %v1897, %v1896
      %v1942 = vpack.c.b16 %v1899, %v1898
      %v1943 = vpack.c.b16 %v1901, %v1900
      %v1944 = vpack.c.b16 %v1903, %v1902
      %v1945 = vpack.c.b16 %v1905, %v1904
      %v1946 = vpack.c.b16 %v1907, %v1906
      %v1947 = vpack.c.b16 %v1909, %v1908
      %v1948 = vpack.c.b16 %v1911, %v1910
      %v1949 = vpack.c.b16 %v1913, %v1912
      %v1950 = vpack.c.b16 %v1915, %v1914
      %v1951 = vpack.c.b16 %v1917, %v1916
      %v1952 = vpack.c.b16 %v1919, %v1918
      %v1953 = vpack.c.b16 %v1921, %v1920
      %v1954 = vpack.c.b16 %v1923, %v1922
      %v1955 = vpack.c.b16 %v1925, %v1924
      %v1956 = vpack.c.b16 %v1927, %v1926
      %v1957 = vpack.c.b16 %v1929, %v1928
      %v1958 = vpack.c.b16 %v1931, %v1930
      %v1959 = vpack.c.b16 %v1933, %v1932
      %v1960 = vpack.c.b16 %v1935, %v1934
      %v1961 = vpack.c.b16 %v1937, %v1936
      %1986 = vmatprep.subr.bf16.mxu0 0
      %1987 = vmatpush1.bf16.msra.mxu0 %v1938
      %1988 = vmatprep.subr.bf16.mxu0 0
      %1989 = vmatpush1.bf16.msra.mxu0 %v1939
      %1990 = vmatprep.subr.bf16.mxu0 0
      %1991 = vmatpush1.bf16.msra.mxu0 %v1940
      %1992 = vmatprep.subr.bf16.mxu0 0
      %1993 = vmatpush1.bf16.msra.mxu0 %v1941
      %1994 = vmatprep.subr.bf16.mxu0 0
      %1995 = vmatpush1.bf16.msra.mxu0 %v1942
      %1996 = vmatprep.subr.bf16.mxu0 0
      %1997 = vmatpush1.bf16.msra.mxu0 %v1943
      %1998 = vmatprep.subr.bf16.mxu0 0
      %1999 = vmatpush1.bf16.msra.mxu0 %v1944
      %2000 = vmatprep.subr.bf16.mxu0 0
      %2001 = vmatpush1.bf16.msra.mxu0 %v1945
      %2002 = vmatprep.subr.bf16.mxu0 0
      %2003 = vmatpush1.bf16.msra.mxu0 %v1946
      %2004 = vmatprep.subr.bf16.mxu0 0
      %2005 = vmatpush1.bf16.msra.mxu0 %v1947
      %2006 = vmatprep.subr.bf16.mxu0 0
      %2007 = vmatpush1.bf16.msra.mxu0 %v1948
      %2008 = vmatprep.subr.bf16.mxu0 0
      %2009 = vmatpush1.bf16.msra.mxu0 %v1949
      %2010 = vmatprep.subr.bf16.mxu0 0
      %2011 = vmatpush1.bf16.msra.mxu0 %v1950
      %2012 = vmatprep.subr.bf16.mxu0 0
      %2013 = vmatpush1.bf16.msra.mxu0 %v1951
      %2014 = vmatprep.subr.bf16.mxu0 0
      %2015 = vmatpush1.bf16.msra.mxu0 %v1952
      %2016 = vmatprep.subr.bf16.mxu0 0
      %2017 = vmatpush1.bf16.msra.mxu0 %v1953
      %2018 = vmatprep.mubr.bf16.mxu0 %v876
      %2019 = vmatmul.mubr.bf16.gmra.mrb[0].mxu0 %v969
      %v2020 = vpop.f32.mrb[0].mxu0
      %v2021 = vadd.f32 0.0, %v2020
      %v2022 = vpop.f32.mrb[0].mxu0
      %v2023 = vpop.f32.mrb[0].mxu0
      %v2024 = vadd.f32 0.0, %v2023
      %v2025 = vpop.f32.mrb[0].mxu0
      %2026 = vmatprep.mubr.bf16.mxu0 %v877
      %2027 = vmatmul.mubr.bf16.gmra.mrb[0].mxu0 %v970
      %v2028 = vpop.f32.mrb[0].mxu0
      %v2029 = vadd.f32 0.0, %v2028
      %v2030 = vpop.f32.mrb[0].mxu0
      %v2031 = vpop.f32.mrb[0].mxu0
      %v2032 = vadd.f32 0.0, %v2031
      %v2033 = vpop.f32.mrb[0].mxu0
      %2034 = vmatprep.mubr.bf16.mxu0 %v878
      %2035 = vmatmul.mubr.bf16.gmra.mrb[0].mxu0 %v971
      %v2036 = vpop.f32.mrb[0].mxu0
      %v2037 = vadd.f32 0.0, %v2036
      %v2038 = vpop.f32.mrb[0].mxu0
      %v2039 = vpop.f32.mrb[0].mxu0
      %v2040 = vadd.f32 0.0, %v2039
      %v2041 = vpop.f32.mrb[0].mxu0
      %2042 = vmatprep.mubr.bf16.mxu0 %v879
      %2043 = vmatmul.mubr.bf16.gmra.mrb[0].mxu0 %v972
      %v2044 = vpop.f32.mrb[0].mxu0
      %v2045 = vadd.f32 0.0, %v2044
      %v2046 = vpop.f32.mrb[0].mxu0
      %v2047 = vpop.f32.mrb[0].mxu0
      %v2048 = vadd.f32 0.0, %v2047
      %v2049 = vpop.f32.mrb[0].mxu0
      %2050 = vmatprep.mubr.bf16.mxu0 %v880
      %2051 = vmatmul.mubr.bf16.gmra.mrb[0].mxu0 %v973
      %v2052 = vpop.f32.mrb[0].mxu0
      %v2053 = vadd.f32 0.0, %v2052
      %v2054 = vpop.f32.mrb[0].mxu0
      %v2055 = vpop.f32.mrb[0].mxu0
      %v2056 = vadd.f32 0.0, %v2055
      %v2057 = vpop.f32.mrb[0].mxu0
      %2058 = vmatprep.mubr.bf16.mxu0 %v881
      %2059 = vmatmul.mubr.bf16.gmra.mrb[0].mxu0 %v974
      %v2060 = vpop.f32.mrb[0].mxu0
      %v2061 = vadd.f32 0.0, %v2060
      %v2062 = vpop.f32.mrb[0].mxu0
      %v2063 = vpop.f32.mrb[0].mxu0
      %v2064 = vadd.f32 0.0, %v2063
      %v2065 = vpop.f32.mrb[0].mxu0
      %2066 = vmatprep.mubr.bf16.mxu0 %v882
      %2067 = vmatmul.mubr.bf16.gmra.mrb[0].mxu0 %v975
      %v2068 = vpop.f32.mrb[0].mxu0
      %v2069 = vadd.f32 0.0, %v2068
      %v2070 = vpop.f32.mrb[0].mxu0
      %v2071 = vpop.f32.mrb[0].mxu0
      %v2072 = vadd.f32 0.0, %v2071
      %v2073 = vpop.f32.mrb[0].mxu0
      %2074 = vmatprep.mubr.bf16.mxu0 %v883
      %2075 = vmatmul.mubr.bf16.gmra.mrb[0].mxu0 %v976
      %v2076 = vpop.f32.mrb[0].mxu0
      %v2077 = vadd.f32 0.0, %v2076
      %v2078 = vpop.f32.mrb[0].mxu0
      %v2079 = vpop.f32.mrb[0].mxu0
      %v2080 = vadd.f32 0.0, %v2079
      %v2081 = vpop.f32.mrb[0].mxu0
      %2082 = vdwg.mxu0
      %2083 = vmatprep.subr.bf16.mxu0 0
      %2084 = vmatpush1.bf16.msra.mxu0 %v1954
      %2085 = vmatprep.subr.bf16.mxu0 0
      %2086 = vmatpush1.bf16.msra.mxu0 %v1955
      %2087 = vmatprep.subr.bf16.mxu0 0
      %2088 = vmatpush1.bf16.msra.mxu0 %v1956
      %2089 = vmatprep.subr.bf16.mxu0 0
      %2090 = vmatpush1.bf16.msra.mxu0 %v1957
      %2091 = vmatprep.subr.bf16.mxu0 0
      %2092 = vmatpush1.bf16.msra.mxu0 %v1958
      %2093 = vmatprep.subr.bf16.mxu0 0
      %2094 = vmatpush1.bf16.msra.mxu0 %v1959
      %2095 = vmatprep.subr.bf16.mxu0 0
      %2096 = vmatpush1.bf16.msra.mxu0 %v1960
      %2097 = vmatprep.subr.bf16.mxu0 0
      %2098 = vmatpush1.bf16.msra.mxu0 %v1961
      %2099 = vmatprep.subr.bf16.mxu0 0
      %2100 = vmatpush1.bf16.msra.mxu0 0
      %2101 = vmatprep.subr.bf16.mxu0 0
      %2102 = vmatpush1.bf16.msra.mxu0 0
      %2103 = vmatprep.subr.bf16.mxu0 0
      %2104 = vmatpush1.bf16.msra.mxu0 0
      %2105 = vmatprep.subr.bf16.mxu0 0
      %2106 = vmatpush1.bf16.msra.mxu0 0
      %2107 = vmatprep.subr.bf16.mxu0 0
      %2108 = vmatpush1.bf16.msra.mxu0 0
      %2109 = vmatprep.subr.bf16.mxu0 0
      %2110 = vmatpush1.bf16.msra.mxu0 0
      %2111 = vmatprep.subr.bf16.mxu0 0
      %2112 = vmatpush1.bf16.msra.mxu0 0
      %2113 = vmatprep.subr.bf16.mxu0 0
      %2114 = vmatpush1.bf16.msra.mxu0 0
      %2115 = vmatprep.mubr.bf16.mxu0 0
      %2116 = vmatmul.mubr.bf16.gmra.mrb[0].mxu0 %v1012
      %v2117 = vpop.f32.mrb[0].mxu0
      %v2118 = vadd.f32 %v2021, %v2117
      %v2119 = vpop.f32.mrb[0].mxu0
      %v2120 = vpop.f32.mrb[0].mxu0
      %v2121 = vadd.f32 %v2024, %v2120
      %v2122 = vpop.f32.mrb[0].mxu0
      %2123 = vmatprep.mubr.bf16.mxu0 0
      %2124 = vmatmul.mubr.bf16.gmra.mrb[0].mxu0 %v1013
      %v2125 = vpop.f32.mrb[0].mxu0
      %v2126 = vadd.f32 %v2029, %v2125
      %v2127 = vpop.f32.mrb[0].mxu0
      %v2128 = vpop.f32.mrb[0].mxu0
      %v2129 = vadd.f32 %v2032, %v2128
      %v2130 = vpop.f32.mrb[0].mxu0
      %2131 = vmatprep.mubr.bf16.mxu0 0
      %2132 = vmatmul.mubr.bf16.gmra.mrb[0].mxu0 %v1014
      %v2133 = vpop.f32.mrb[0].mxu0
      %v2134 = vadd.f32 %v2037, %v2133
      %v2135 = vpop.f32.mrb[0].mxu0
      %v2136 = vpop.f32.mrb[0].mxu0
      %v2137 = vadd.f32 %v2040, %v2136
      %v2138 = vpop.f32.mrb[0].mxu0
      %2139 = vmatprep.mubr.bf16.mxu0 0
      %2140 = vmatmul.mubr.bf16.gmra.mrb[0].mxu0 %v1015
      %v2141 = vpop.f32.mrb[0].mxu0
      %v2142 = vadd.f32 %v2045, %v2141
      %v2143 = vpop.f32.mrb[0].mxu0
      %v2144 = vpop.f32.mrb[0].mxu0
      %v2145 = vadd.f32 %v2048, %v2144
      %v2146 = vpop.f32.mrb[0].mxu0
      %2147 = vmatprep.mubr.bf16.mxu0 0
      %2148 = vmatmul.mubr.bf16.gmra.mrb[0].mxu0 %v1016
      %v2149 = vpop.f32.mrb[0].mxu0
      %v2150 = vadd.f32 %v2053, %v2149
      %v2151 = vpop.f32.mrb[0].mxu0
      %v2152 = vpop.f32.mrb[0].mxu0
      %v2153 = vadd.f32 %v2056, %v2152
      %v2154 = vpop.f32.mrb[0].mxu0
      %2155 = vmatprep.mubr.bf16.mxu0 0
      %2156 = vmatmul.mubr.bf16.gmra.mrb[0].mxu0 %v1017
      %v2157 = vpop.f32.mrb[0].mxu0
      %v2158 = vadd.f32 %v2061, %v2157
      %v2159 = vpop.f32.mrb[0].mxu0
      %v2160 = vpop.f32.mrb[0].mxu0
      %v2161 = vadd.f32 %v2064, %v2160
      %v2162 = vpop.f32.mrb[0].mxu0
      %2163 = vmatprep.mubr.bf16.mxu0 0
      %2164 = vmatmul.mubr.bf16.gmra.mrb[0].mxu0 %v1018
      %v2165 = vpop.f32.mrb[0].mxu0
      %v2166 = vadd.f32 %v2069, %v2165
      %v2167 = vpop.f32.mrb[0].mxu0
      %v2168 = vpop.f32.mrb[0].mxu0
      %v2169 = vadd.f32 %v2072, %v2168
      %v2170 = vpop.f32.mrb[0].mxu0
      %2171 = vmatprep.mubr.bf16.mxu0 0
      %2172 = vmatmul.mubr.bf16.gmra.mrb[0].mxu0 %v1019
      %v2173 = vpop.f32.mrb[0].mxu0
      %v2174 = vadd.f32 %v2077, %v2173
      %v2175 = vpop.f32.mrb[0].mxu0
      %v2176 = vpop.f32.mrb[0].mxu0
      %v2177 = vadd.f32 %v2080, %v2176
      %v2178 = vpop.f32.mrb[0].mxu0
      %2179 = vdwg.mxu0
      %v2180 = vadd.f32 %v1731, %v2118
      %v2181 = vadd.f32 %v1734, %v2121
      %v2182 = vadd.f32 %v1739, %v2126
      %v2183 = vadd.f32 %v1742, %v2129
      %v2184 = vadd.f32 %v1747, %v2134
      %v2185 = vadd.f32 %v1750, %v2137
      %v2186 = vadd.f32 %v1755, %v2142
      %v2187 = vadd.f32 %v1758, %v2145
      %v2188 = vadd.f32 %v1763, %v2150
      %v2189 = vadd.f32 %v1766, %v2153
      %v2190 = vadd.f32 %v1771, %v2158
      %v2191 = vadd.f32 %v1774, %v2161
      %v2192 = vadd.f32 %v1779, %v2166
      %v2193 = vadd.f32 %v1782, %v2169
      %v2194 = vadd.f32 %v1787, %v2174
      %v2195 = vadd.f32 %v1790, %v2177
      %v2196 = vld [vmem:[%s4] sm:$0x1]
      %v2198 = vlaneseq
      %v2199 = vshrl.u32 %v2198, 7
      %v2200 = vsub.s32 0, %v2199
      %v2201 = vrot.slane %v2196, %v2200
      %v2203 = vadd.f32 %v2180, %v2201
      %v2204 = vadd.f32 %v2181, %v2201
      %v2205 = vadd.f32 %v2182, %v2201
      %v2206 = vadd.f32 %v2183, %v2201
      %v2207 = vadd.f32 %v2184, %v2201
      %v2208 = vadd.f32 %v2185, %v2201
      %v2209 = vadd.f32 %v2186, %v2201
      %v2210 = vadd.f32 %v2187, %v2201
      %v2211 = vadd.f32 %v2188, %v2201
      %v2212 = vadd.f32 %v2189, %v2201
      %v2213 = vadd.f32 %v2190, %v2201
      %v2214 = vadd.f32 %v2191, %v2201
      %v2215 = vadd.f32 %v2192, %v2201
      %v2216 = vadd.f32 %v2193, %v2201
      %v2217 = vadd.f32 %v2194, %v2201
      %v2218 = vadd.f32 %v2195, %v2201
      %v2219 = vmax.f32 %v2203, 0.0
      %v2220 = vmax.f32 %v2204, 0.0
      %v2221 = vmax.f32 %v2205, 0.0
      %v2222 = vmax.f32 %v2206, 0.0
      %v2223 = vmax.f32 %v2207, 0.0
      %v2224 = vmax.f32 %v2208, 0.0
      %v2225 = vmax.f32 %v2209, 0.0
      %v2226 = vmax.f32 %v2210, 0.0
      %v2227 = vmax.f32 %v2211, 0.0
      %v2228 = vmax.f32 %v2212, 0.0
      %v2229 = vmax.f32 %v2213, 0.0
      %v2230 = vmax.f32 %v2214, 0.0
      %v2231 = vmax.f32 %v2215, 0.0
      %v2232 = vmax.f32 %v2216, 0.0
      %v2233 = vmax.f32 %v2217, 0.0
      %v2234 = vmax.f32 %v2218, 0.0
      %v2235 = vpack.c.bf16 %v2220, %v2219
      %v2236 = vpack.c.bf16 %v2222, %v2221
      %v2237 = vpack.c.bf16 %v2224, %v2223
      %v2238 = vpack.c.bf16 %v2226, %v2225
      %v2239 = vpack.c.bf16 %v2228, %v2227
      %v2240 = vpack.c.bf16 %v2230, %v2229
      %v2241 = vpack.c.bf16 %v2232, %v2231
      %v2242 = vpack.c.bf16 %v2234, %v2233
      %v2243 = vld [vmem:[%s5] sm:$0xf]
      %v2244 = vld [vmem:[%s5 + $0x4] sm:$0xf]
      %v2245 = vld [vmem:[%s5 + $0x8] sm:$0xf]
      %v2246 = vld [vmem:[%s5 + $0xc] sm:$0xf]
      %v2247 = vld [vmem:[%s5 + $0x10] sm:$0xf]
      %v2248 = vld [vmem:[%s5 + $0x14] sm:$0xf]
      %v2249 = vld [vmem:[%s5 + $0x18] sm:$0xf]
      %v2250 = vld [vmem:[%s5 + $0x1c] sm:$0xf]
      %v2251 = vld [vmem:[%s5 + $0x20] sm:$0xf]
      %v2252 = vld [vmem:[%s5 + $0x24] sm:$0xf]
      %v2253 = vld [vmem:[%s5 + $0x28] sm:$0xf]
      %v2254 = vld [vmem:[%s5 + $0x2c] sm:$0xf]
      %v2255 = vld [vmem:[%s5 + $0x30] sm:$0xf]
      %v2256 = vld [vmem:[%s5 + $0x34] sm:$0xf]
      %v2257 = vld [vmem:[%s5 + $0x38] sm:$0xf]
      %v2258 = vld [vmem:[%s5 + $0x3c] sm:$0xf]
      %v2259 = vld [vmem:[%s335] sm:$0xf]
      %v2260 = vld [vmem:[%s335 + $0x4] sm:$0xf]
      %v2261 = vld [vmem:[%s335 + $0x8] sm:$0xf]
      %v2262 = vld [vmem:[%s335 + $0xc] sm:$0xf]
      %v2263 = vld [vmem:[%s335 + $0x10] sm:$0xf]
      %v2264 = vld [vmem:[%s335 + $0x14] sm:$0xf]
      %v2265 = vld [vmem:[%s335 + $0x18] sm:$0xf]
      %v2266 = vld [vmem:[%s335 + $0x1c] sm:$0xf]
      %v2267 = vld [vmem:[%s335 + $0x20] sm:$0xf]
      %v2268 = vld [vmem:[%s335 + $0x24] sm:$0xf]
      %v2269 = vld [vmem:[%s335 + $0x28] sm:$0xf]
      %v2270 = vld [vmem:[%s335 + $0x2c] sm:$0xf]
      %v2271 = vld [vmem:[%s335 + $0x30] sm:$0xf]
      %v2272 = vld [vmem:[%s335 + $0x34] sm:$0xf]
      %v2273 = vld [vmem:[%s335 + $0x38] sm:$0xf]
      %v2274 = vld [vmem:[%s335 + $0x3c] sm:$0xf]
      %v2275 = vld [vmem:[%s6] sm:$0xf]
      %v2276 = vld [vmem:[%s6 + $0x4] sm:$0xf]
      %v2277 = vld [vmem:[%s6 + $0x8] sm:$0xf]
      %v2278 = vld [vmem:[%s6 + $0xc] sm:$0xf]
      %v2279 = vld [vmem:[%s6 + $0x10] sm:$0xf]
      %v2280 = vld [vmem:[%s6 + $0x14] sm:$0xf]
      %v2281 = vld [vmem:[%s6 + $0x18] sm:$0xf]
      %v2282 = vld [vmem:[%s6 + $0x1c] sm:$0xf]
      %v2283 = vld [vmem:[%s6 + $0x20] sm:$0xf]
      %v2284 = vld [vmem:[%s6 + $0x24] sm:$0xf]
      %v2285 = vld [vmem:[%s6 + $0x28] sm:$0xf]
      %v2286 = vld [vmem:[%s6 + $0x2c] sm:$0xf]
      %v2287 = vld [vmem:[%s6 + $0x30] sm:$0xf]
      %v2288 = vld [vmem:[%s6 + $0x34] sm:$0xf]
      %v2289 = vld [vmem:[%s6 + $0x38] sm:$0xf]
      %v2290 = vld [vmem:[%s6 + $0x3c] sm:$0xf]
      %v2307 = vunpack.c.l.b16 %v2259
      %v2308 = vunpack.c.l.b16 %v2260
      %v2309 = vunpack.c.l.b16 %v2261
      %v2310 = vunpack.c.l.b16 %v2262
      %v2311 = vunpack.c.l.b16 %v2263
      %v2312 = vunpack.c.l.b16 %v2264
      %v2313 = vunpack.c.l.b16 %v2265
      %v2314 = vunpack.c.l.b16 %v2266
      %v2315 = vunpack.c.l.b16 %v2267
      %v2316 = vunpack.c.l.b16 %v2268
      %v2317 = vunpack.c.l.b16 %v2269
      %v2318 = vunpack.c.l.b16 %v2270
      %v2319 = vunpack.c.l.b16 %v2271
      %v2320 = vunpack.c.l.b16 %v2272
      %v2321 = vunpack.c.l.b16 %v2273
      %v2322 = vunpack.c.l.b16 %v2274
      %v2323 = vpack.c.b16 %v2308, %v2307
      %v2324 = vpack.c.b16 %v2310, %v2309
      %v2325 = vpack.c.b16 %v2312, %v2311
      %v2326 = vpack.c.b16 %v2314, %v2313
      %v2327 = vpack.c.b16 %v2316, %v2315
      %v2328 = vpack.c.b16 %v2318, %v2317
      %v2329 = vpack.c.b16 %v2320, %v2319
      %v2330 = vpack.c.b16 %v2322, %v2321
      %v2355 = vunpack.c.l.b16 %v2275
      %v2356 = vunpack.c.l.b16 %v2276
      %v2357 = vunpack.c.l.b16 %v2277
      %v2358 = vunpack.c.l.b16 %v2278
      %v2359 = vunpack.c.l.b16 %v2279
      %v2360 = vunpack.c.l.b16 %v2280
      %v2361 = vunpack.c.l.b16 %v2281
      %v2362 = vunpack.c.l.b16 %v2282
      %v2363 = vunpack.c.l.b16 %v2283
      %v2364 = vunpack.c.l.b16 %v2284
      %v2365 = vunpack.c.l.b16 %v2285
      %v2366 = vunpack.c.l.b16 %v2286
      %v2367 = vunpack.c.l.b16 %v2287
      %v2368 = vunpack.c.l.b16 %v2288
      %v2369 = vunpack.c.l.b16 %v2289
      %v2370 = vunpack.c.l.b16 %v2290
      %v2371 = vpack.c.b16 %v2356, %v2355
      %v2372 = vpack.c.b16 %v2358, %v2357
      %v2373 = vpack.c.b16 %v2360, %v2359
      %v2374 = vpack.c.b16 %v2362, %v2361
      %v2375 = vpack.c.b16 %v2364, %v2363
      %v2376 = vpack.c.b16 %v2366, %v2365
      %v2377 = vpack.c.b16 %v2368, %v2367
      %v2378 = vpack.c.b16 %v2370, %v2369
      %2387 = vmatprep.subr.bf16.mxu0 0
      %2388 = vmatpush1.bf16.msra.mxu0 %v2371
      %2389 = vmatprep.subr.bf16.mxu0 0
      %2390 = vmatpush1.bf16.msra.mxu0 %v2372
      %2391 = vmatprep.subr.bf16.mxu0 0
      %2392 = vmatpush1.bf16.msra.mxu0 %v2373
      %2393 = vmatprep.subr.bf16.mxu0 0
      %2394 = vmatpush1.bf16.msra.mxu0 %v2374
      %2395 = vmatprep.subr.bf16.mxu0 0
      %2396 = vmatpush1.bf16.msra.mxu0 %v2375
      %2397 = vmatprep.subr.bf16.mxu0 0
      %2398 = vmatpush1.bf16.msra.mxu0 %v2376
      %2399 = vmatprep.subr.bf16.mxu0 0
      %2400 = vmatpush1.bf16.msra.mxu0 %v2377
      %2401 = vmatprep.subr.bf16.mxu0 0
      %2402 = vmatpush1.bf16.msra.mxu0 %v2378
      %2403 = vmatprep.subr.bf16.mxu0 0
      %2404 = vmatpush1.bf16.msra.mxu0 0
      %2405 = vmatprep.subr.bf16.mxu0 0
      %2406 = vmatpush1.bf16.msra.mxu0 0
      %2407 = vmatprep.subr.bf16.mxu0 0
      %2408 = vmatpush1.bf16.msra.mxu0 0
      %2409 = vmatprep.subr.bf16.mxu0 0
      %2410 = vmatpush1.bf16.msra.mxu0 0
      %2411 = vmatprep.subr.bf16.mxu0 0
      %2412 = vmatpush1.bf16.msra.mxu0 0
      %2413 = vmatprep.subr.bf16.mxu0 0
      %2414 = vmatpush1.bf16.msra.mxu0 0
      %2415 = vmatprep.subr.bf16.mxu0 0
      %2416 = vmatpush1.bf16.msra.mxu0 0
      %2417 = vmatprep.subr.bf16.mxu0 0
      %2418 = vmatpush1.bf16.msra.mxu0 0
      %2419 = vmatprep.mubr.bf16.mxu0 0
      %2420 = vmatmul.mubr.bf16.gmra.mrb[0].mxu0 %v2323
      %v2421 = vpop.f32.mrb[0].mxu0
      %v2422 = vadd.f32 0.0, %v2421
      %v2423 = vpop.f32.mrb[0].mxu0
      %v2424 = vpop.f32.mrb[0].mxu0
      %v2425 = vadd.f32 0.0, %v2424
      %v2426 = vpop.f32.mrb[0].mxu0
      %2427 = vmatprep.mubr.bf16.mxu0 0
      %2428 = vmatmul.mubr.bf16.gmra.mrb[0].mxu0 %v2324
      %v2429 = vpop.f32.mrb[0].mxu0
      %v2430 = vadd.f32 0.0, %v2429
      %v2431 = vpop.f32.mrb[0].mxu0
      %v2432 = vpop.f32.mrb[0].mxu0
      %v2433 = vadd.f32 0.0, %v2432
      %v2434 = vpop.f32.mrb[0].mxu0
      %2435 = vmatprep.mubr.bf16.mxu0 0
      %2436 = vmatmul.mubr.bf16.gmra.mrb[0].mxu0 %v2325
      %v2437 = vpop.f32.mrb[0].mxu0
      %v2438 = vadd.f32 0.0, %v2437
      %v2439 = vpop.f32.mrb[0].mxu0
      %v2440 = vpop.f32.mrb[0].mxu0
      %v2441 = vadd.f32 0.0, %v2440
      %v2442 = vpop.f32.mrb[0].mxu0
      %2443 = vmatprep.mubr.bf16.mxu0 0
      %2444 = vmatmul.mubr.bf16.gmra.mrb[0].mxu0 %v2326
      %v2445 = vpop.f32.mrb[0].mxu0
      %v2446 = vadd.f32 0.0, %v2445
      %v2447 = vpop.f32.mrb[0].mxu0
      %v2448 = vpop.f32.mrb[0].mxu0
      %v2449 = vadd.f32 0.0, %v2448
      %v2450 = vpop.f32.mrb[0].mxu0
      %2451 = vmatprep.mubr.bf16.mxu0 0
      %2452 = vmatmul.mubr.bf16.gmra.mrb[0].mxu0 %v2327
      %v2453 = vpop.f32.mrb[0].mxu0
      %v2454 = vadd.f32 0.0, %v2453
      %v2455 = vpop.f32.mrb[0].mxu0
      %v2456 = vpop.f32.mrb[0].mxu0
      %v2457 = vadd.f32 0.0, %v2456
      %v2458 = vpop.f32.mrb[0].mxu0
      %2459 = vmatprep.mubr.bf16.mxu0 0
      %2460 = vmatmul.mubr.bf16.gmra.mrb[0].mxu0 %v2328
      %v2461 = vpop.f32.mrb[0].mxu0
      %v2462 = vadd.f32 0.0, %v2461
      %v2463 = vpop.f32.mrb[0].mxu0
      %v2464 = vpop.f32.mrb[0].mxu0
      %v2465 = vadd.f32 0.0, %v2464
      %v2466 = vpop.f32.mrb[0].mxu0
      %2467 = vmatprep.mubr.bf16.mxu0 0
      %2468 = vmatmul.mubr.bf16.gmra.mrb[0].mxu0 %v2329
      %v2469 = vpop.f32.mrb[0].mxu0
      %v2470 = vadd.f32 0.0, %v2469
      %v2471 = vpop.f32.mrb[0].mxu0
      %v2472 = vpop.f32.mrb[0].mxu0
      %v2473 = vadd.f32 0.0, %v2472
      %v2474 = vpop.f32.mrb[0].mxu0
      %2475 = vmatprep.mubr.bf16.mxu0 0
      %2476 = vmatmul.mubr.bf16.gmra.mrb[0].mxu0 %v2330
      %v2477 = vpop.f32.mrb[0].mxu0
      %v2478 = vadd.f32 0.0, %v2477
      %v2479 = vpop.f32.mrb[0].mxu0
      %v2480 = vpop.f32.mrb[0].mxu0
      %v2481 = vadd.f32 0.0, %v2480
      %v2482 = vpop.f32.mrb[0].mxu0
      %2483 = vdwg.mxu0
      %v2500 = vunpack.c.l.b16 %v2243
      %v2501 = vunpack.c.l.b16 %v2244
      %v2502 = vunpack.c.l.b16 %v2245
      %v2503 = vunpack.c.l.b16 %v2246
      %v2504 = vunpack.c.l.b16 %v2247
      %v2505 = vunpack.c.l.b16 %v2248
      %v2506 = vunpack.c.l.b16 %v2249
      %v2507 = vunpack.c.l.b16 %v2250
      %v2508 = vunpack.c.l.b16 %v2251
      %v2509 = vunpack.c.l.b16 %v2252
      %v2510 = vunpack.c.l.b16 %v2253
      %v2511 = vunpack.c.l.b16 %v2254
      %v2512 = vunpack.c.l.b16 %v2255
      %v2513 = vunpack.c.l.b16 %v2256
      %v2514 = vunpack.c.l.b16 %v2257
      %v2515 = vunpack.c.l.b16 %v2258
      %v2516 = vpack.c.b16 %v2501, %v2500
      %v2517 = vpack.c.b16 %v2503, %v2502
      %v2518 = vpack.c.b16 %v2505, %v2504
      %v2519 = vpack.c.b16 %v2507, %v2506
      %v2520 = vpack.c.b16 %v2509, %v2508
      %v2521 = vpack.c.b16 %v2511, %v2510
      %v2522 = vpack.c.b16 %v2513, %v2512
      %v2523 = vpack.c.b16 %v2515, %v2514
      %2532 = vmatprep.subr.bf16.mxu0 0
      %2533 = vmatpush1.bf16.msra.mxu0 %v2516
      %2534 = vmatprep.subr.bf16.mxu0 0
      %2535 = vmatpush1.bf16.msra.mxu0 %v2517
      %2536 = vmatprep.subr.bf16.mxu0 0
      %2537 = vmatpush1.bf16.msra.mxu0 %v2518
      %2538 = vmatprep.subr.bf16.mxu0 0
      %2539 = vmatpush1.bf16.msra.mxu0 %v2519
      %2540 = vmatprep.subr.bf16.mxu0 0
      %2541 = vmatpush1.bf16.msra.mxu0 %v2520
      %2542 = vmatprep.subr.bf16.mxu0 0
      %2543 = vmatpush1.bf16.msra.mxu0 %v2521
      %2544 = vmatprep.subr.bf16.mxu0 0
      %2545 = vmatpush1.bf16.msra.mxu0 %v2522
      %2546 = vmatprep.subr.bf16.mxu0 0
      %2547 = vmatpush1.bf16.msra.mxu0 %v2523
      %2548 = vmatprep.subr.bf16.mxu0 0
      %2549 = vmatpush1.bf16.msra.mxu0 0
      %2550 = vmatprep.subr.bf16.mxu0 0
      %2551 = vmatpush1.bf16.msra.mxu0 0
      %2552 = vmatprep.subr.bf16.mxu0 0
      %2553 = vmatpush1.bf16.msra.mxu0 0
      %2554 = vmatprep.subr.bf16.mxu0 0
      %2555 = vmatpush1.bf16.msra.mxu0 0
      %2556 = vmatprep.subr.bf16.mxu0 0
      %2557 = vmatpush1.bf16.msra.mxu0 0
      %2558 = vmatprep.subr.bf16.mxu0 0
      %2559 = vmatpush1.bf16.msra.mxu0 0
      %2560 = vmatprep.subr.bf16.mxu0 0
      %2561 = vmatpush1.bf16.msra.mxu0 0
      %2562 = vmatprep.subr.bf16.mxu0 0
      %2563 = vmatpush1.bf16.msra.mxu0 0
      %2564 = vmatprep.mubr.bf16.mxu0 0
      %2565 = vmatmul.mubr.bf16.gmra.mrb[0].mxu0 %v2235
      %v2566 = vpop.f32.mrb[0].mxu0
      %v2567 = vadd.f32 %v2422, %v2566
      %v2568 = vpop.f32.mrb[0].mxu0
      %v2569 = vpop.f32.mrb[0].mxu0
      %v2570 = vadd.f32 %v2425, %v2569
      %v2571 = vpop.f32.mrb[0].mxu0
      %2572 = vmatprep.mubr.bf16.mxu0 0
      %2573 = vmatmul.mubr.bf16.gmra.mrb[0].mxu0 %v2236
      %v2574 = vpop.f32.mrb[0].mxu0
      %v2575 = vadd.f32 %v2430, %v2574
      %v2576 = vpop.f32.mrb[0].mxu0
      %v2577 = vpop.f32.mrb[0].mxu0
      %v2578 = vadd.f32 %v2433, %v2577
      %v2579 = vpop.f32.mrb[0].mxu0
      %2580 = vmatprep.mubr.bf16.mxu0 0
      %2581 = vmatmul.mubr.bf16.gmra.mrb[0].mxu0 %v2237
      %v2582 = vpop.f32.mrb[0].mxu0
      %v2583 = vadd.f32 %v2438, %v2582
      %v2584 = vpop.f32.mrb[0].mxu0
      %v2585 = vpop.f32.mrb[0].mxu0
      %v2586 = vadd.f32 %v2441, %v2585
      %v2587 = vpop.f32.mrb[0].mxu0
      %2588 = vmatprep.mubr.bf16.mxu0 0
      %2589 = vmatmul.mubr.bf16.gmra.mrb[0].mxu0 %v2238
      %v2590 = vpop.f32.mrb[0].mxu0
      %v2591 = vadd.f32 %v2446, %v2590
      %v2592 = vpop.f32.mrb[0].mxu0
      %v2593 = vpop.f32.mrb[0].mxu0
      %v2594 = vadd.f32 %v2449, %v2593
      %v2595 = vpop.f32.mrb[0].mxu0
      %2596 = vmatprep.mubr.bf16.mxu0 0
      %2597 = vmatmul.mubr.bf16.gmra.mrb[0].mxu0 %v2239
      %v2598 = vpop.f32.mrb[0].mxu0
      %v2599 = vadd.f32 %v2454, %v2598
      %v2600 = vpop.f32.mrb[0].mxu0
      %v2601 = vpop.f32.mrb[0].mxu0
      %v2602 = vadd.f32 %v2457, %v2601
      %v2603 = vpop.f32.mrb[0].mxu0
      %2604 = vmatprep.mubr.bf16.mxu0 0
      %2605 = vmatmul.mubr.bf16.gmra.mrb[0].mxu0 %v2240
      %v2606 = vpop.f32.mrb[0].mxu0
      %v2607 = vadd.f32 %v2462, %v2606
      %v2608 = vpop.f32.mrb[0].mxu0
      %v2609 = vpop.f32.mrb[0].mxu0
      %v2610 = vadd.f32 %v2465, %v2609
      %v2611 = vpop.f32.mrb[0].mxu0
      %2612 = vmatprep.mubr.bf16.mxu0 0
      %2613 = vmatmul.mubr.bf16.gmra.mrb[0].mxu0 %v2241
      %v2614 = vpop.f32.mrb[0].mxu0
      %v2615 = vadd.f32 %v2470, %v2614
      %v2616 = vpop.f32.mrb[0].mxu0
      %v2617 = vpop.f32.mrb[0].mxu0
      %v2618 = vadd.f32 %v2473, %v2617
      %v2619 = vpop.f32.mrb[0].mxu0
      %2620 = vmatprep.mubr.bf16.mxu0 0
      %2621 = vmatmul.mubr.bf16.gmra.mrb[0].mxu0 %v2242
      %v2622 = vpop.f32.mrb[0].mxu0
      %v2623 = vadd.f32 %v2478, %v2622
      %v2624 = vpop.f32.mrb[0].mxu0
      %v2625 = vpop.f32.mrb[0].mxu0
      %v2626 = vadd.f32 %v2481, %v2625
      %v2627 = vpop.f32.mrb[0].mxu0
      %2628 = vdwg.mxu0
      %v2629 = vld [vmem:[%s7] sm:$0x1]
      %v2631 = vlaneseq
      %v2632 = vshrl.u32 %v2631, 7
      %v2633 = vsub.s32 0, %v2632
      %v2634 = vrot.slane %v2629, %v2633
      %v2636 = vadd.f32 %v2567, %v2634
      %v2637 = vadd.f32 %v2570, %v2634
      %v2638 = vadd.f32 %v2575, %v2634
      %v2639 = vadd.f32 %v2578, %v2634
      %v2640 = vadd.f32 %v2583, %v2634
      %v2641 = vadd.f32 %v2586, %v2634
      %v2642 = vadd.f32 %v2591, %v2634
      %v2643 = vadd.f32 %v2594, %v2634
      %v2644 = vadd.f32 %v2599, %v2634
      %v2645 = vadd.f32 %v2602, %v2634
      %v2646 = vadd.f32 %v2607, %v2634
      %v2647 = vadd.f32 %v2610, %v2634
      %v2648 = vadd.f32 %v2615, %v2634
      %v2649 = vadd.f32 %v2618, %v2634
      %v2650 = vadd.f32 %v2623, %v2634
      %v2651 = vadd.f32 %v2626, %v2634
      %v2652 = vmax.f32 %v2636, 0.0
      %v2653 = vmax.f32 %v2637, 0.0
      %v2654 = vmax.f32 %v2638, 0.0
      %v2655 = vmax.f32 %v2639, 0.0
      %v2656 = vmax.f32 %v2640, 0.0
      %v2657 = vmax.f32 %v2641, 0.0
      %v2658 = vmax.f32 %v2642, 0.0
      %v2659 = vmax.f32 %v2643, 0.0
      %v2660 = vmax.f32 %v2644, 0.0
      %v2661 = vmax.f32 %v2645, 0.0
      %v2662 = vmax.f32 %v2646, 0.0
      %v2663 = vmax.f32 %v2647, 0.0
      %v2664 = vmax.f32 %v2648, 0.0
      %v2665 = vmax.f32 %v2649, 0.0
      %v2666 = vmax.f32 %v2650, 0.0
      %v2667 = vmax.f32 %v2651, 0.0
      %v2668 = vpack.c.bf16 %v2653, %v2652
      %v2669 = vpack.c.bf16 %v2655, %v2654
      %v2670 = vpack.c.bf16 %v2657, %v2656
      %v2671 = vpack.c.bf16 %v2659, %v2658
      %v2672 = vpack.c.bf16 %v2661, %v2660
      %v2673 = vpack.c.bf16 %v2663, %v2662
      %v2674 = vpack.c.bf16 %v2665, %v2664
      %v2675 = vpack.c.bf16 %v2667, %v2666
      %v2684 = vunpack.c.l.b16 %v2668
      %v2685 = vunpack.c.h.b16 %v2668
      %v2686 = vunpack.c.l.b16 %v2669
      %v2687 = vunpack.c.h.b16 %v2669
      %v2688 = vunpack.c.l.b16 %v2670
      %v2689 = vunpack.c.h.b16 %v2670
      %v2690 = vunpack.c.l.b16 %v2671
      %v2691 = vunpack.c.h.b16 %v2671
      %v2692 = vunpack.c.l.b16 %v2672
      %v2693 = vunpack.c.h.b16 %v2672
      %v2694 = vunpack.c.l.b16 %v2673
      %v2695 = vunpack.c.h.b16 %v2673
      %v2696 = vunpack.c.l.b16 %v2674
      %v2697 = vunpack.c.h.b16 %v2674
      %v2698 = vunpack.c.l.b16 %v2675
      %v2699 = vunpack.c.h.b16 %v2675
      %v2700 = vpack.c.b16 %v2684, %v2684
      %v2701 = vpack.c.b16 %v2685, %v2685
      %v2702 = vpack.c.b16 %v2686, %v2686
      %v2703 = vpack.c.b16 %v2687, %v2687
      %v2704 = vpack.c.b16 %v2688, %v2688
      %v2705 = vpack.c.b16 %v2689, %v2689
      %v2706 = vpack.c.b16 %v2690, %v2690
      %v2707 = vpack.c.b16 %v2691, %v2691
      %v2708 = vpack.c.b16 %v2692, %v2692
      %v2709 = vpack.c.b16 %v2693, %v2693
      %v2710 = vpack.c.b16 %v2694, %v2694
      %v2711 = vpack.c.b16 %v2695, %v2695
      %v2712 = vpack.c.b16 %v2696, %v2696
      %v2713 = vpack.c.b16 %v2697, %v2697
      %v2714 = vpack.c.b16 %v2698, %v2698
      %v2715 = vpack.c.b16 %v2699, %v2699
      %2732 = vst [vmem:[%s329] sm:$0xf] %v2700
      %2733 = vst [vmem:[%s329 + $0x4] sm:$0xf] %v2701
      %2734 = vst [vmem:[%s329 + $0x8] sm:$0xf] %v2702
      %2735 = vst [vmem:[%s329 + $0xc] sm:$0xf] %v2703
      %2736 = vst [vmem:[%s329 + $0x10] sm:$0xf] %v2704
      %2737 = vst [vmem:[%s329 + $0x14] sm:$0xf] %v2705
      %2738 = vst [vmem:[%s329 + $0x18] sm:$0xf] %v2706
      %2739 = vst [vmem:[%s329 + $0x1c] sm:$0xf] %v2707
      %2740 = vst [vmem:[%s329 + $0x20] sm:$0xf] %v2708
      %2741 = vst [vmem:[%s329 + $0x24] sm:$0xf] %v2709
      %2742 = vst [vmem:[%s329 + $0x28] sm:$0xf] %v2710
      %2743 = vst [vmem:[%s329 + $0x2c] sm:$0xf] %v2711
      %2744 = vst [vmem:[%s329 + $0x30] sm:$0xf] %v2712
      %2745 = vst [vmem:[%s329 + $0x34] sm:$0xf] %v2713
      %2746 = vst [vmem:[%s329 + $0x38] sm:$0xf] %v2714
      %2747 = vst [vmem:[%s329 + $0x3c] sm:$0xf] %v2715
      %s2748 = smul.u32 8, %s24
      %p2749 = scmp.lt.s32.totalorder %s23, 1
      %s2750 = scalar_select %p2749, %s23, 1
      %p2751 = scmp.lt.s32.totalorder %s2748, 15
      %s2752 = scalar_select %p2751, %s2748, 15
      %s2753 = smul.addr %s2752, 2
      %s2754 = smul.addr %s2750, 32
      %s2755 = sadd.s32 %s2753, %s2754
      %s2756 = smul.addr %s2755, 4
      %s2757 = scalar_lea.vmem %s8, %s2756
      // Predicated region
      $region53: #{bottleneck_forward.1} parent=51 // pred_check
        %p2758 = pneg %p224
      $region54: #{bottleneck_forward.1} parent=51 // pred_check_branch
        %2760 = sbr.rel (%p2758) target = $region56
      $region55: #{bottleneck_forward.1} parent=51 // pred_region
        %s2761 = smul.u32 8, %s24
      $region56: #{bottleneck_forward.1} parent=51 // pred_fallthru
        _
    $region52: #{bottleneck_forward.1} parent=5 // pred_fallthru
      _
    %p2762 = scmp.le.s32.totalorder 2, %s14
    // Predicated region
    $region57: #{bottleneck_forward.1} parent=5 // pred_check
      %p2763 = pneg %p2762
    $region58: #{bottleneck_forward.1} parent=5 // pred_check_branch
      %2765 = sbr.rel (%p2763) target = $region60
    $region59: #{bottleneck_forward.1} parent=5 // pred_region
      %s2766 = ssub.s32 %s14, 2
      // Predicated region
      $region61: #{bottleneck_forward.1} parent=59 // pred_check
        %p2767 = pneg %p230
      $region62: #{bottleneck_forward.1} parent=59 // pred_check_branch
        %2769 = sbr.rel (%p2767) target = $region64
      $region63: #{bottleneck_forward.1} parent=59 // pred_region
        %s2770 = smul.u32 8, %s26
        %p2771 = scmp.lt.s32.totalorder %s25, 1
        %s2772 = scalar_select %p2771, %s25, 1
        %p2773 = scmp.lt.s32.totalorder %s2770, 15
        %s2774 = scalar_select %p2773, %s2770, 15
        %s2775 = smul.addr %s2774, 2
        %s2776 = smul.addr %s2772, 32
        %s2777 = sadd.s32 %s2775, %s2776
        %s2778 = smul.addr %s2777, 4
        %s2779 = scalar_lea.vmem %s8, %s2778
      $region64: #{bottleneck_forward.1} parent=59 // pred_fallthru
        _
    $region60: #{bottleneck_forward.1} parent=5 // pred_fallthru
      _
  $region6: #{bottleneck_forward.1} parent=0 // loop_footer
    %s18 = sadd.s32 1, %s14
  $region7: #{bottleneck_forward.1} parent=0 // loop_footer_branch
    %13 = sbr.rel target = $region3
  $region8: #{bottleneck_forward.1} parent=0 // loop_exit
    _

</llo_original>
